<compile_context>
chip_gen: v7x
topology: tpu7x:2x2x1
jax: 0.10.0
libtpu: 0.0.40
codegen_flags: <defaults>
</compile_context>

<pallas_src>
import jax
import jax.numpy as jnp
import numpy as np
from jax.experimental import pallas as pl
from jax.experimental.pallas import tpu as pltpu

# ---------------- configuration (small shapes consistent with the module) --------------
N, H, W = 2, 8, 8
IN_CHANS = 32
OUT_CHANS = 16                       # expansion=2 -> output channels = 32 == IN_CHANS
EXPANSION = 2
GROUPS = 1
WIDTH_PER_GROUP = 64
BASE_WIDTH = 64
REDUCTION = 16
WIDTH = int(OUT_CHANS * (WIDTH_PER_GROUP / BASE_WIDTH)) * GROUPS   # 16
C_OUT = OUT_CHANS * EXPANSION                                      # 32 (== IN_CHANS)
C_SE = max(C_OUT // REDUCTION, 1)                                  # 2
BN_EPS = 1e-5
M = N * H * W                                                      # 128 flattened pixels

# im2col K axis: 9 taps, each padded to a full 128-lane tile so every store/load in the
# kernel is lane-tile aligned; the zero rows of the padded weight make the padding inert.
KBLK = 128
K_COL = 9 * KBLK                                                   # 1152

_VMEM = pl.BlockSpec(memory_space=pltpu.MemorySpace.VMEM)


# ---------------- the single fused kernel ------------------------------------------------
def _se_bottleneck_kernel(x_ref, w1_ref, b1_ref, w2_ref, b2_ref, w3_ref, b3_ref,
                          sew1t_ref, sew2_ref, o_ref, xp_ref, col_ref):
    """Whole SE bottleneck in one kernel invocation; every intermediate stays in VMEM."""
    # ---- conv1: 1x1 conv (BN scale pre-folded) + bias + ReLU, one (M,Cin)x(Cin,W) GEMM
    y1 = jnp.dot(x_ref[...], w1_ref[...], preferred_element_type=jnp.float32)
    y1 = jnp.maximum(y1 + b1_ref[...], 0.0)                        # (M, WIDTH)

    # ---- spatial zero-padding (padding=1) into VMEM scratch --------------------------
    xp_ref[...] = jnp.zeros_like(xp_ref)
    xp_ref[:, 1:H + 1, 1:W + 1, :] = y1.reshape(N, H, W, WIDTH)

    # ---- im2col: 9 shifted windows packed into lane-tile-aligned blocks --------------
    col_ref[...] = jnp.zeros_like(col_ref)
    for kh in range(3):
        for kw in range(3):
            k = kh * 3 + kw
            col_ref[:, :, :, k * KBLK:k * KBLK + WIDTH] = xp_ref[:, kh:kh + H, kw:kw + W, :]

    # ---- conv2: 3x3 conv (BN-folded) + bias + ReLU as a single GEMM ------------------
    col = col_ref[...].reshape(M, K_COL)
    y2 = jnp.dot(col, w2_ref[...], preferred_element_type=jnp.float32)
    y2 = jnp.maximum(y2 + b2_ref[...], 0.0)                        # (M, WIDTH)

    # ---- conv3: 1x1 conv (BN-folded) + bias ------------------------------------------
    y3 = jnp.dot(y2, w3_ref[...], preferred_element_type=jnp.float32) + b3_ref[...]  # (M, C_OUT)

    # ---- SE: global average pool (per batch) -> FC -> ReLU -> FC -> sigmoid ----------
    y3_3d = y3.reshape(N, H * W, C_OUT)
    pooled = jnp.sum(y3_3d, axis=1) * (1.0 / (H * W))              # (N, C_OUT)
    # The SE FCs are degenerate GEMMs (32x2 / 2x32): compute them on the VPU
    # (broadcast-multiply) + XLU (lane reduction); keep the MXU out of it.
    sew1t = sew1t_ref[...]                                         # (C_SE, C_OUT)
    sew2 = sew2_ref[...]                                           # (C_SE, C_OUT)
    pre_gate = jnp.zeros((N, C_OUT), jnp.float32)
    for j in range(C_SE):
        zj = jnp.sum(pooled * sew1t[j:j + 1, :], axis=-1, keepdims=True)   # (N, 1)
        pre_gate = pre_gate + jnp.maximum(zj, 0.0) * sew2[j:j + 1, :]
    gate = jax.nn.sigmoid(pre_gate)                                # (N, C_OUT)

    # ---- channel scale + residual add + final ReLU -----------------------------------
    y3s = (y3_3d * gate.reshape(N, 1, C_OUT)).reshape(M, C_OUT)
    o_ref[...] = jnp.maximum(y3s + x_ref[...], 0.0)


# ---------------- parameter prep (one-time, outside the kernel) -------------------------
def prepare_params(params):
    """Fold eval-mode BN scales into the conv weights, build the lane-aligned zero-padded
    im2col weight, and transpose the first SE FC for the in-kernel VPU reduction."""
    (w1, s1, b1, w2, s2, b2, w3, s3, b3, sew1, sew2) = params
    w1f = w1 * s1                                                  # (IN_CHANS, WIDTH)
    w3f = w3 * s3                                                  # (WIDTH, C_OUT)
    w2f = (w2 * s2.reshape(1, 1, 1, WIDTH)).reshape(9, WIDTH, WIDTH)
    w2p = jnp.zeros((K_COL, WIDTH), jnp.float32)
    for k in range(9):
        w2p = w2p.at[k * KBLK:k * KBLK + WIDTH, :].set(w2f[k])
    sew1t = sew1.T                                                 # (C_SE, C_OUT)
    return (w1f, b1, w2p, b2, w3f, b3, sew1t, sew2)


@jax.jit
def se_bottleneck_forward(x, fused_params):
    (w1f, b1, w2p, b2, w3f, b3, sew1t, sew2) = fused_params
    x2d = x.reshape(M, IN_CHANS)
    out2d = pl.pallas_call(
        _se_bottleneck_kernel,
        out_shape=jax.ShapeDtypeStruct((M, C_OUT), jnp.float32),
        in_specs=[_VMEM] * 9,
        out_specs=_VMEM,
        scratch_shapes=[
            pltpu.VMEM((N, H + 2, W + 2, WIDTH), jnp.float32),     # padded conv1 output
            pltpu.VMEM((N, H, W, K_COL), jnp.float32),             # im2col patches
        ],
    )(x2d, w1f, b1, w2p, b2, w3f, b3, sew1t, sew2)
    return out2d.reshape(N, H, W, C_OUT)


# ---------------- pure-JAX reference for sanity checking --------------------------------
def reference_forward(x, params):
    (w1, s1, b1, w2, s2, b2, w3, s3, b3, sew1, sew2) = params
    dn = ('NHWC', 'HWIO', 'NHWC')
    y = jax.lax.conv_general_dilated(x, w1.reshape(1, 1, IN_CHANS, WIDTH), (1, 1),
                                     'VALID', dimension_numbers=dn)
    y = jnp.maximum(y * s1.reshape(1, 1, 1, -1) + b1.reshape(1, 1, 1, -1), 0.0)
    y = jax.lax.conv_general_dilated(y, w2, (1, 1), ((1, 1), (1, 1)),
                                     dimension_numbers=dn)
    y = jnp.maximum(y * s2.reshape(1, 1, 1, -1) + b2.reshape(1, 1, 1, -1), 0.0)
    y = jax.lax.conv_general_dilated(y, w3.reshape(1, 1, WIDTH, C_OUT), (1, 1),
                                     'VALID', dimension_numbers=dn)
    y = y * s3.reshape(1, 1, 1, -1) + b3.reshape(1, 1, 1, -1)
    pooled = jnp.mean(y, axis=(1, 2))
    z = jnp.maximum(pooled @ sew1, 0.0)
    gate = jax.nn.sigmoid(z @ sew2)
    y = y * gate[:, None, None, :]
    return jnp.maximum(y + x, 0.0)


# ---------------- deterministic parameter construction ----------------------------------
def _bn_fold(key, c):
    kg, kb, km, kv = jax.random.split(key, 4)
    gamma = 1.0 + 0.1 * jax.random.normal(kg, (c,), jnp.float32)
    beta = 0.1 * jax.random.normal(kb, (c,), jnp.float32)
    mean = 0.1 * jax.random.normal(km, (c,), jnp.float32)
    var = jnp.abs(jax.random.normal(kv, (c,), jnp.float32)) + 0.5
    scale = gamma / jnp.sqrt(var + BN_EPS)
    bias = beta - mean * scale
    return scale.reshape(1, c), bias.reshape(1, c)


def make_params():
    key = jax.random.PRNGKey(0)
    ks = jax.random.split(key, 9)
    w1 = 0.1 * jax.random.normal(ks[0], (IN_CHANS, WIDTH), jnp.float32)
    w2 = 0.1 * jax.random.normal(ks[1], (3, 3, WIDTH, WIDTH), jnp.float32)
    w3 = 0.1 * jax.random.normal(ks[2], (WIDTH, C_OUT), jnp.float32)
    sew1 = 0.1 * jax.random.normal(ks[3], (C_OUT, C_SE), jnp.float32)
    sew2 = 0.1 * jax.random.normal(ks[4], (C_SE, C_OUT), jnp.float32)
    s1, b1 = _bn_fold(ks[5], WIDTH)
    s2, b2 = _bn_fold(ks[6], WIDTH)
    s3, b3 = _bn_fold(ks[7], C_OUT)
    x = jax.random.normal(ks[8], (N, H, W, IN_CHANS), jnp.float32)
    return x, (w1, s1, b1, w2, s2, b2, w3, s3, b3, sew1, sew2)


if __name__ == "__main__":
    x, params = make_params()
    fused = prepare_params(params)
    out = jax.block_until_ready(se_bottleneck_forward(x, fused))
    ref = jax.block_until_ready(reference_forward(x, params))
    assert out.shape == (N, H, W, C_OUT)
    np.testing.assert_allclose(np.asarray(out), np.asarray(ref), rtol=2e-3, atol=2e-3)
    print("KERNEL_OK")
</pallas_src>

<mosaic_0001>
module attributes {stable_mosaic.version = 11 : i64} {
  func.func @_se_bottleneck_kernel(%arg0: memref<128x32xf32, #tpu.memory_space<vmem>>, %arg1: memref<32x16xf32, #tpu.memory_space<vmem>>, %arg2: memref<1x16xf32, #tpu.memory_space<vmem>>, %arg3: memref<1152x16xf32, #tpu.memory_space<vmem>>, %arg4: memref<1x16xf32, #tpu.memory_space<vmem>>, %arg5: memref<16x32xf32, #tpu.memory_space<vmem>>, %arg6: memref<1x32xf32, #tpu.memory_space<vmem>>, %arg7: memref<2x32xf32, #tpu.memory_space<vmem>>, %arg8: memref<2x32xf32, #tpu.memory_space<vmem>>, %arg9: memref<128x32xf32, #tpu.memory_space<vmem>>, %arg10: memref<2x10x10x16xf32, #tpu.memory_space<vmem>>, %arg11: memref<2x8x8x1152xf32, #tpu.memory_space<vmem>>) attributes {dimension_semantics = [], scalar_prefetch = 0 : i64, scratch_operands = 2 : i64, tpu.core_type = #tpu.core_type<tc>} {
    %c0 = arith.constant 0 : index
    %c0_0 = arith.constant 0 : index
    %0 = vector.load %arg0[%c0, %c0_0] : memref<128x32xf32, #tpu.memory_space<vmem>>, vector<128x32xf32>
    %c0_1 = arith.constant 0 : index
    %c0_2 = arith.constant 0 : index
    %1 = vector.load %arg1[%c0_1, %c0_2] : memref<32x16xf32, #tpu.memory_space<vmem>>, vector<32x16xf32>
    %cst = arith.constant dense<0.000000e+00> : vector<128x16xf32>
    %2 = tpu.matmul %0, %1, %cst {dimension_numbers = #tpu.dot_dimension_numbers<[1], [0], [0], [1], [0, 0, 1, 1], [], []>} : vector<128x32xf32>, vector<32x16xf32>, vector<128x16xf32> -> vector<128x16xf32>
    %c0_3 = arith.constant 0 : index
    %c0_4 = arith.constant 0 : index
    %3 = vector.load %arg2[%c0_3, %c0_4] : memref<1x16xf32, #tpu.memory_space<vmem>>, vector<1x16xf32>
    %4 = vector.broadcast %3 : vector<1x16xf32> to vector<128x16xf32>
    %5 = arith.addf %2, %4 : vector<128x16xf32>
    %cst_5 = arith.constant 0.000000e+00 : f32
    %6 = vector.broadcast %cst_5 : f32 to vector<128x16xf32>
    %7 = arith.maximumf %5, %6 : vector<128x16xf32>
    %cst_6 = arith.constant 0.000000e+00 : f32
    %8 = vector.broadcast %cst_6 : f32 to vector<2x10x10x16xf32>
    %c0_7 = arith.constant 0 : index
    %c0_8 = arith.constant 0 : index
    %c0_9 = arith.constant 0 : index
    %c0_10 = arith.constant 0 : index
    %9 = vector.load %arg10[%c0_7, %c0_8, %c0_9, %c0_10] : memref<2x10x10x16xf32, #tpu.memory_space<vmem>>, vector<2x10x10x16xf32>
    tpu.vector_store %arg10[%c0_7, %c0_8, %c0_9, %c0_10], %8 {strides = array<i32>} : memref<2x10x10x16xf32, #tpu.memory_space<vmem>>, vector<2x10x10x16xf32>,
    %10 = vector.shape_cast %7 : vector<128x16xf32> to vector<2x8x8x16xf32>
    %c0_11 = arith.constant 0 : index
    %c1 = arith.constant 1 : index
    %c1_12 = arith.constant 1 : index
    %c0_13 = arith.constant 0 : index
    %11 = vector.load %arg10[%c0_11, %c1, %c1_12, %c0_13] : memref<2x10x10x16xf32, #tpu.memory_space<vmem>>, vector<2x8x8x16xf32>
    tpu.vector_store %arg10[%c0_11, %c1, %c1_12, %c0_13], %10 {strides = array<i32>} : memref<2x10x10x16xf32, #tpu.memory_space<vmem>>, vector<2x8x8x16xf32>,
    %cst_14 = arith.constant 0.000000e+00 : f32
    %12 = vector.broadcast %cst_14 : f32 to vector<2x8x8x1152xf32>
    %c0_15 = arith.constant 0 : index
    %c0_16 = arith.constant 0 : index
    %c0_17 = arith.constant 0 : index
    %c0_18 = arith.constant 0 : index
    %13 = vector.load %arg11[%c0_15, %c0_16, %c0_17, %c0_18] : memref<2x8x8x1152xf32, #tpu.memory_space<vmem>>, vector<2x8x8x1152xf32>
    tpu.vector_store %arg11[%c0_15, %c0_16, %c0_17, %c0_18], %12 {strides = array<i32>} : memref<2x8x8x1152xf32, #tpu.memory_space<vmem>>, vector<2x8x8x1152xf32>,
    %c0_19 = arith.constant 0 : index
    %c0_20 = arith.constant 0 : index
    %c0_21 = arith.constant 0 : index
    %c0_22 = arith.constant 0 : index
    %14 = vector.load %arg10[%c0_19, %c0_20, %c0_21, %c0_22] : memref<2x10x10x16xf32, #tpu.memory_space<vmem>>, vector<2x8x8x16xf32>
    %c0_23 = arith.constant 0 : index
    %c0_24 = arith.constant 0 : index
    %c0_25 = arith.constant 0 : index
    %c0_26 = arith.constant 0 : index
    %15 = vector.load %arg11[%c0_23, %c0_24, %c0_25, %c0_26] : memref<2x8x8x1152xf32, #tpu.memory_space<vmem>>, vector<2x8x8x16xf32>
    tpu.vector_store %arg11[%c0_23, %c0_24, %c0_25, %c0_26], %14 {strides = array<i32>} : memref<2x8x8x1152xf32, #tpu.memory_space<vmem>>, vector<2x8x8x16xf32>,
    %c0_27 = arith.constant 0 : index
    %c0_28 = arith.constant 0 : index
    %c1_29 = arith.constant 1 : index
    %c0_30 = arith.constant 0 : index
    %16 = vector.load %arg10[%c0_27, %c0_28, %c1_29, %c0_30] : memref<2x10x10x16xf32, #tpu.memory_space<vmem>>, vector<2x8x8x16xf32>
    %c0_31 = arith.constant 0 : index
    %c0_32 = arith.constant 0 : index
    %c0_33 = arith.constant 0 : index
    %c128 = arith.constant 128 : index
    %17 = vector.load %arg11[%c0_31, %c0_32, %c0_33, %c128] : memref<2x8x8x1152xf32, #tpu.memory_space<vmem>>, vector<2x8x8x16xf32>
    tpu.vector_store %arg11[%c0_31, %c0_32, %c0_33, %c128], %16 {strides = array<i32>} : memref<2x8x8x1152xf32, #tpu.memory_space<vmem>>, vector<2x8x8x16xf32>,
    %c0_34 = arith.constant 0 : index
    %c0_35 = arith.constant 0 : index
    %c2 = arith.constant 2 : index
    %c0_36 = arith.constant 0 : index
    %18 = vector.load %arg10[%c0_34, %c0_35, %c2, %c0_36] : memref<2x10x10x16xf32, #tpu.memory_space<vmem>>, vector<2x8x8x16xf32>
    %c0_37 = arith.constant 0 : index
    %c0_38 = arith.constant 0 : index
    %c0_39 = arith.constant 0 : index
    %c256 = arith.constant 256 : index
    %19 = vector.load %arg11[%c0_37, %c0_38, %c0_39, %c256] : memref<2x8x8x1152xf32, #tpu.memory_space<vmem>>, vector<2x8x8x16xf32>
    tpu.vector_store %arg11[%c0_37, %c0_38, %c0_39, %c256], %18 {strides = array<i32>} : memref<2x8x8x1152xf32, #tpu.memory_space<vmem>>, vector<2x8x8x16xf32>,
    %c0_40 = arith.constant 0 : index
    %c1_41 = arith.constant 1 : index
    %c0_42 = arith.constant 0 : index
    %c0_43 = arith.constant 0 : index
    %20 = vector.load %arg10[%c0_40, %c1_41, %c0_42, %c0_43] : memref<2x10x10x16xf32, #tpu.memory_space<vmem>>, vector<2x8x8x16xf32>
    %c0_44 = arith.constant 0 : index
    %c0_45 = arith.constant 0 : index
    %c0_46 = arith.constant 0 : index
    %c384 = arith.constant 384 : index
    %21 = vector.load %arg11[%c0_44, %c0_45, %c0_46, %c384] : memref<2x8x8x1152xf32, #tpu.memory_space<vmem>>, vector<2x8x8x16xf32>
    tpu.vector_store %arg11[%c0_44, %c0_45, %c0_46, %c384], %20 {strides = array<i32>} : memref<2x8x8x1152xf32, #tpu.memory_space<vmem>>, vector<2x8x8x16xf32>,
    %c0_47 = arith.constant 0 : index
    %c1_48 = arith.constant 1 : index
    %c1_49 = arith.constant 1 : index
    %c0_50 = arith.constant 0 : index
    %22 = vector.load %arg10[%c0_47, %c1_48, %c1_49, %c0_50] : memref<2x10x10x16xf32, #tpu.memory_space<vmem>>, vector<2x8x8x16xf32>
    %c0_51 = arith.constant 0 : index
    %c0_52 = arith.constant 0 : index
    %c0_53 = arith.constant 0 : index
    %c512 = arith.constant 512 : index
    %23 = vector.load %arg11[%c0_51, %c0_52, %c0_53, %c512] : memref<2x8x8x1152xf32, #tpu.memory_space<vmem>>, vector<2x8x8x16xf32>
    tpu.vector_store %arg11[%c0_51, %c0_52, %c0_53, %c512], %22 {strides = array<i32>} : memref<2x8x8x1152xf32, #tpu.memory_space<vmem>>, vector<2x8x8x16xf32>,
    %c0_54 = arith.constant 0 : index
    %c1_55 = arith.constant 1 : index
    %c2_56 = arith.constant 2 : index
    %c0_57 = arith.constant 0 : index
    %24 = vector.load %arg10[%c0_54, %c1_55, %c2_56, %c0_57] : memref<2x10x10x16xf32, #tpu.memory_space<vmem>>, vector<2x8x8x16xf32>
    %c0_58 = arith.constant 0 : index
    %c0_59 = arith.constant 0 : index
    %c0_60 = arith.constant 0 : index
    %c640 = arith.constant 640 : index
    %25 = vector.load %arg11[%c0_58, %c0_59, %c0_60, %c640] : memref<2x8x8x1152xf32, #tpu.memory_space<vmem>>, vector<2x8x8x16xf32>
    tpu.vector_store %arg11[%c0_58, %c0_59, %c0_60, %c640], %24 {strides = array<i32>} : memref<2x8x8x1152xf32, #tpu.memory_space<vmem>>, vector<2x8x8x16xf32>,
    %c0_61 = arith.constant 0 : index
    %c2_62 = arith.constant 2 : index
    %c0_63 = arith.constant 0 : index
    %c0_64 = arith.constant 0 : index
    %26 = vector.load %arg10[%c0_61, %c2_62, %c0_63, %c0_64] : memref<2x10x10x16xf32, #tpu.memory_space<vmem>>, vector<2x8x8x16xf32>
    %c0_65 = arith.constant 0 : index
    %c0_66 = arith.constant 0 : index
    %c0_67 = arith.constant 0 : index
    %c768 = arith.constant 768 : index
    %27 = vector.load %arg11[%c0_65, %c0_66, %c0_67, %c768] : memref<2x8x8x1152xf32, #tpu.memory_space<vmem>>, vector<2x8x8x16xf32>
    tpu.vector_store %arg11[%c0_65, %c0_66, %c0_67, %c768], %26 {strides = array<i32>} : memref<2x8x8x1152xf32, #tpu.memory_space<vmem>>, vector<2x8x8x16xf32>,
    %c0_68 = arith.constant 0 : index
    %c2_69 = arith.constant 2 : index
    %c1_70 = arith.constant 1 : index
    %c0_71 = arith.constant 0 : index
    %28 = vector.load %arg10[%c0_68, %c2_69, %c1_70, %c0_71] : memref<2x10x10x16xf32, #tpu.memory_space<vmem>>, vector<2x8x8x16xf32>
    %c0_72 = arith.constant 0 : index
    %c0_73 = arith.constant 0 : index
    %c0_74 = arith.constant 0 : index
    %c896 = arith.constant 896 : index
    %29 = vector.load %arg11[%c0_72, %c0_73, %c0_74, %c896] : memref<2x8x8x1152xf32, #tpu.memory_space<vmem>>, vector<2x8x8x16xf32>
    tpu.vector_store %arg11[%c0_72, %c0_73, %c0_74, %c896], %28 {strides = array<i32>} : memref<2x8x8x1152xf32, #tpu.memory_space<vmem>>, vector<2x8x8x16xf32>,
    %c0_75 = arith.constant 0 : index
    %c2_76 = arith.constant 2 : index
    %c2_77 = arith.constant 2 : index
    %c0_78 = arith.constant 0 : index
    %30 = vector.load %arg10[%c0_75, %c2_76, %c2_77, %c0_78] : memref<2x10x10x16xf32, #tpu.memory_space<vmem>>, vector<2x8x8x16xf32>
    %c0_79 = arith.constant 0 : index
    %c0_80 = arith.constant 0 : index
    %c0_81 = arith.constant 0 : index
    %c1024 = arith.constant 1024 : index
    %31 = vector.load %arg11[%c0_79, %c0_80, %c0_81, %c1024] : memref<2x8x8x1152xf32, #tpu.memory_space<vmem>>, vector<2x8x8x16xf32>
    tpu.vector_store %arg11[%c0_79, %c0_80, %c0_81, %c1024], %30 {strides = array<i32>} : memref<2x8x8x1152xf32, #tpu.memory_space<vmem>>, vector<2x8x8x16xf32>,
    %c0_82 = arith.constant 0 : index
    %c0_83 = arith.constant 0 : index
    %c0_84 = arith.constant 0 : index
    %c0_85 = arith.constant 0 : index
    %32 = vector.load %arg11[%c0_82, %c0_83, %c0_84, %c0_85] : memref<2x8x8x1152xf32, #tpu.memory_space<vmem>>, vector<2x8x8x1152xf32>
    %33 = vector.shape_cast %32 : vector<2x8x8x1152xf32> to vector<128x1152xf32>
    %c0_86 = arith.constant 0 : index
    %c0_87 = arith.constant 0 : index
    %34 = vector.load %arg3[%c0_86, %c0_87] : memref<1152x16xf32, #tpu.memory_space<vmem>>, vector<1152x16xf32>
    %cst_88 = arith.constant dense<0.000000e+00> : vector<128x16xf32>
    %35 = tpu.matmul %33, %34, %cst_88 {dimension_numbers = #tpu.dot_dimension_numbers<[1], [0], [0], [1], [0, 0, 1, 1], [], []>} : vector<128x1152xf32>, vector<1152x16xf32>, vector<128x16xf32> -> vector<128x16xf32>
    %c0_89 = arith.constant 0 : index
    %c0_90 = arith.constant 0 : index
    %36 = vector.load %arg4[%c0_89, %c0_90] : memref<1x16xf32, #tpu.memory_space<vmem>>, vector<1x16xf32>
    %37 = vector.broadcast %36 : vector<1x16xf32> to vector<128x16xf32>
    %38 = arith.addf %35, %37 : vector<128x16xf32>
    %cst_91 = arith.constant 0.000000e+00 : f32
    %39 = vector.broadcast %cst_91 : f32 to vector<128x16xf32>
    %40 = arith.maximumf %38, %39 : vector<128x16xf32>
    %c0_92 = arith.constant 0 : index
    %c0_93 = arith.constant 0 : index
    %41 = vector.load %arg5[%c0_92, %c0_93] : memref<16x32xf32, #tpu.memory_space<vmem>>, vector<16x32xf32>
    %cst_94 = arith.constant dense<0.000000e+00> : vector<128x32xf32>
    %42 = tpu.matmul %40, %41, %cst_94 {dimension_numbers = #tpu.dot_dimension_numbers<[1], [0], [0], [1], [0, 0, 1, 1], [], []>} : vector<128x16xf32>, vector<16x32xf32>, vector<128x32xf32> -> vector<128x32xf32>
    %c0_95 = arith.constant 0 : index
    %c0_96 = arith.constant 0 : index
    %43 = vector.load %arg6[%c0_95, %c0_96] : memref<1x32xf32, #tpu.memory_space<vmem>>, vector<1x32xf32>
    %44 = vector.broadcast %43 : vector<1x32xf32> to vector<128x32xf32>
    %45 = arith.addf %42, %44 : vector<128x32xf32>
    %46 = vector.shape_cast %45 : vector<128x32xf32> to vector<2x64x32xf32>
    %cst_97 = arith.constant dense<0.000000e+00> : vector<2x32xf32>
    %47 = vector.multi_reduction <add>, %46, %cst_97 [1] : vector<2x64x32xf32> to vector<2x32xf32>
    %cst_98 = arith.constant 1.562500e-02 : f32
    %48 = vector.broadcast %cst_98 : f32 to vector<2x32xf32>
    %49 = arith.mulf %47, %48 : vector<2x32xf32>
    %c0_99 = arith.constant 0 : index
    %c0_100 = arith.constant 0 : index
    %50 = vector.load %arg7[%c0_99, %c0_100] : memref<2x32xf32, #tpu.memory_space<vmem>>, vector<2x32xf32>
    %c0_101 = arith.constant 0 : index
    %c0_102 = arith.constant 0 : index
    %51 = vector.load %arg8[%c0_101, %c0_102] : memref<2x32xf32, #tpu.memory_space<vmem>>, vector<2x32xf32>
    %cst_103 = arith.constant 0.000000e+00 : f32
    %52 = vector.broadcast %cst_103 : f32 to vector<2x32xf32>
    %53 = vector.extract_strided_slice %50 {offsets = [0, 0], sizes = [1, 32], strides = [1, 1]} : vector<2x32xf32> to vector<1x32xf32>
    %54 = vector.broadcast %53 : vector<1x32xf32> to vector<2x32xf32>
    %55 = arith.mulf %49, %54 : vector<2x32xf32>
    %cst_104 = arith.constant dense<0.000000e+00> : vector<2xf32>
    %56 = vector.multi_reduction <add>, %55, %cst_104 [1] : vector<2x32xf32> to vector<2xf32>
    %57 = vector.shape_cast %56 : vector<2xf32> to vector<2x1xf32>
    %cst_105 = arith.constant 0.000000e+00 : f32
    %58 = vector.broadcast %cst_105 : f32 to vector<2x1xf32>
    %59 = arith.maximumf %57, %58 : vector<2x1xf32>
    %60 = vector.extract_strided_slice %51 {offsets = [0, 0], sizes = [1, 32], strides = [1, 1]} : vector<2x32xf32> to vector<1x32xf32>
    %61 = vector.broadcast %59 : vector<2x1xf32> to vector<2x32xf32>
    %62 = vector.broadcast %60 : vector<1x32xf32> to vector<2x32xf32>
    %63 = arith.mulf %61, %62 : vector<2x32xf32>
    %64 = arith.addf %52, %63 : vector<2x32xf32>
    %65 = vector.extract_strided_slice %50 {offsets = [1, 0], sizes = [1, 32], strides = [1, 1]} : vector<2x32xf32> to vector<1x32xf32>
    %66 = vector.broadcast %65 : vector<1x32xf32> to vector<2x32xf32>
    %67 = arith.mulf %49, %66 : vector<2x32xf32>
    %cst_106 = arith.constant dense<0.000000e+00> : vector<2xf32>
    %68 = vector.multi_reduction <add>, %67, %cst_106 [1] : vector<2x32xf32> to vector<2xf32>
    %69 = vector.shape_cast %68 : vector<2xf32> to vector<2x1xf32>
    %cst_107 = arith.constant 0.000000e+00 : f32
    %70 = vector.broadcast %cst_107 : f32 to vector<2x1xf32>
    %71 = arith.maximumf %69, %70 : vector<2x1xf32>
    %72 = vector.extract_strided_slice %51 {offsets = [1, 0], sizes = [1, 32], strides = [1, 1]} : vector<2x32xf32> to vector<1x32xf32>
    %73 = vector.broadcast %71 : vector<2x1xf32> to vector<2x32xf32>
    %74 = vector.broadcast %72 : vector<1x32xf32> to vector<2x32xf32>
    %75 = arith.mulf %73, %74 : vector<2x32xf32>
    %76 = arith.addf %64, %75 : vector<2x32xf32>
    %77 = arith.negf %76 : vector<2x32xf32>
    %78 = math.exp %77 : vector<2x32xf32>
    %cst_108 = arith.constant 1.000000e+00 : f32
    %79 = vector.broadcast %cst_108 : f32 to vector<2x32xf32>
    %80 = arith.addf %79, %78 : vector<2x32xf32>
    %81 = arith.divf %79, %80 : vector<2x32xf32>
    %82 = vector.shape_cast %81 : vector<2x32xf32> to vector<2x1x32xf32>
    %83 = vector.broadcast %82 : vector<2x1x32xf32> to vector<2x64x32xf32>
    %84 = arith.mulf %46, %83 : vector<2x64x32xf32>
    %85 = vector.shape_cast %84 : vector<2x64x32xf32> to vector<128x32xf32>
    %c0_109 = arith.constant 0 : index
    %c0_110 = arith.constant 0 : index
    %86 = vector.load %arg0[%c0_109, %c0_110] : memref<128x32xf32, #tpu.memory_space<vmem>>, vector<128x32xf32>
    %87 = arith.addf %85, %86 : vector<128x32xf32>
    %cst_111 = arith.constant 0.000000e+00 : f32
    %88 = vector.broadcast %cst_111 : f32 to vector<128x32xf32>
    %89 = arith.maximumf %87, %88 : vector<128x32xf32>
    %c0_112 = arith.constant 0 : index
    %c0_113 = arith.constant 0 : index
    %90 = vector.load %arg9[%c0_112, %c0_113] : memref<128x32xf32, #tpu.memory_space<vmem>>, vector<128x32xf32>
    tpu.vector_store %arg9[%c0_112, %c0_113], %89 {strides = array<i32>} : memref<128x32xf32, #tpu.memory_space<vmem>>, vector<128x32xf32>,
    return
  }
}

</mosaic_0001>

<llo_original>
// kernel: se_bottleneck_forward.1
$region0: #{se_bottleneck_forward.1}
  #allocation0 [shape = 'u32[]', space=smem, size = 0x4, offset = 0x4, fixed_abs, tag = 'smem constant byte address 0x4 - core index']
  #allocation1 [shape = 'u32[144,128]{1,0:T(1,128)}', space=vmem, size = 0x12000, scoped, tag = 'internal scratch']
  #allocation2 [shape = 'f32[2,10,10,16]{3,2,1,0:T(8,128)}', space=vmem, size = 0x28000, scoped, tag = 'scratch operand']
  #allocation3 [shape = 'f32[2,8,8,1152]{3,2,1,0:T(8,128)}', space=vmem, size = 0x90000, scoped, tag = 'scratch operand']
  %s0 = inlined_call_operand.vmem [shape: f32[128,32], index: 0, kind: input, shape index: {}]
  %s1 = inlined_call_operand.vmem [shape: f32[32,16], index: 1, kind: input, shape index: {}]
  %s2 = inlined_call_operand.vmem [shape: f32[1,16], index: 2, kind: input, shape index: {}]
  %s3 = inlined_call_operand.vmem [shape: f32[1152,16], index: 3, kind: input, shape index: {}]
  %s4 = inlined_call_operand.vmem [shape: f32[1,16], index: 4, kind: input, shape index: {}]
  %s5 = inlined_call_operand.vmem [shape: f32[16,32], index: 5, kind: input, shape index: {}]
  %s6 = inlined_call_operand.vmem [shape: f32[1,32], index: 6, kind: input, shape index: {}]
  %s7 = inlined_call_operand.vmem [shape: f32[2,32], index: 7, kind: input, shape index: {}]
  %s8 = inlined_call_operand.vmem [shape: f32[2,32], index: 8, kind: input, shape index: {}]
  %s9 = inlined_call_operand.hbm [shape: f32[128,32], index: 9, kind: output, shape index: {}]
  %s10 = sld [smem:[#allocation0]]
  $region46: #{se_bottleneck_forward.1} parent=0
    _
  %s12 = ssub.s32 1, %s10
  %s13 = scalar_select 0, %s12, %s10
  $region1: #{se_bottleneck_forward.1} parent=0
    #allocation4 [shape = 'u8[65536]{0}', space=vmem, size = 0x10000, scoped, tag = 'output window, operand 0, single buffered']
    #allocation5 [shape = 's32[1]{0}', space=sflag, size = 0x4, scoped, tag = 'scoped memory for se_bottleneck_forward.1']
    %14 = vsyncpa [#allocation5], 0
    // Predicated region
    $region2: #{se_bottleneck_forward.1} parent=1 // pred_check
      _
    $region3: #{se_bottleneck_forward.1} parent=1 // pred_check_branch
      %16 = sbr.rel (0) target = $region5
    $region4: #{se_bottleneck_forward.1} parent=1 // pred_region
      _
    $region5: #{se_bottleneck_forward.1} parent=1 // pred_fallthru
      _
    // Predicated region
    $region6: #{se_bottleneck_forward.1} parent=1 // pred_check
      _
    $region7: #{se_bottleneck_forward.1} parent=1 // pred_check_branch
      %18 = sbr.rel (0) target = $region9
    $region8: #{se_bottleneck_forward.1} parent=1 // pred_region
      _
    $region9: #{se_bottleneck_forward.1} parent=1 // pred_fallthru
      _
    // Predicated region
    $region10: #{se_bottleneck_forward.1} parent=1 // pred_check
      _
    $region11: #{se_bottleneck_forward.1} parent=1 // pred_check_branch
      %20 = sbr.rel (0) target = $region13
    $region12: #{se_bottleneck_forward.1} parent=1 // pred_region
      _
    $region13: #{se_bottleneck_forward.1} parent=1 // pred_fallthru
      _
    // Predicated region
    $region14: #{se_bottleneck_forward.1} parent=1 // pred_check
      _
    $region15: #{se_bottleneck_forward.1} parent=1 // pred_check_branch
      %22 = sbr.rel (0) target = $region17
    $region16: #{se_bottleneck_forward.1} parent=1 // pred_region
      _
    $region17: #{se_bottleneck_forward.1} parent=1 // pred_fallthru
      _
    // Predicated region
    $region18: #{se_bottleneck_forward.1} parent=1 // pred_check
      _
    $region19: #{se_bottleneck_forward.1} parent=1 // pred_check_branch
      %24 = sbr.rel (0) target = $region21
    $region20: #{se_bottleneck_forward.1} parent=1 // pred_region
      _
    $region21: #{se_bottleneck_forward.1} parent=1 // pred_fallthru
      _
    // Predicated region
    $region22: #{se_bottleneck_forward.1} parent=1 // pred_check
      _
    $region23: #{se_bottleneck_forward.1} parent=1 // pred_check_branch
      %26 = sbr.rel (0) target = $region25
    $region24: #{se_bottleneck_forward.1} parent=1 // pred_region
      _
    $region25: #{se_bottleneck_forward.1} parent=1 // pred_fallthru
      _
    // Predicated region
    $region26: #{se_bottleneck_forward.1} parent=1 // pred_check
      _
    $region27: #{se_bottleneck_forward.1} parent=1 // pred_check_branch
      %28 = sbr.rel (0) target = $region29
    $region28: #{se_bottleneck_forward.1} parent=1 // pred_region
      _
    $region29: #{se_bottleneck_forward.1} parent=1 // pred_fallthru
      _
    // Predicated region
    $region30: #{se_bottleneck_forward.1} parent=1 // pred_check
      _
    $region31: #{se_bottleneck_forward.1} parent=1 // pred_check_branch
      %30 = sbr.rel (0) target = $region33
    $region32: #{se_bottleneck_forward.1} parent=1 // pred_region
      _
    $region33: #{se_bottleneck_forward.1} parent=1 // pred_fallthru
      _
    // Predicated region
    $region34: #{se_bottleneck_forward.1} parent=1 // pred_check
      _
    $region35: #{se_bottleneck_forward.1} parent=1 // pred_check_branch
      %32 = sbr.rel (0) target = $region37
    $region36: #{se_bottleneck_forward.1} parent=1 // pred_region
      _
    $region37: #{se_bottleneck_forward.1} parent=1 // pred_fallthru
      _
    %v33 = vld [vmem:[%s0] sm:$0xff]
    %v34 = vld [vmem:[%s0 + $0x8] sm:$0xff]
    %v35 = vld [vmem:[%s0 + $0x10] sm:$0xff]
    %v36 = vld [vmem:[%s0 + $0x18] sm:$0xff]
    %v37 = vld [vmem:[%s0 + $0x20] sm:$0xff]
    %v38 = vld [vmem:[%s0 + $0x28] sm:$0xff]
    %v39 = vld [vmem:[%s0 + $0x30] sm:$0xff]
    %v40 = vld [vmem:[%s0 + $0x38] sm:$0xff]
    %v41 = vld [vmem:[%s0 + $0x40] sm:$0xff]
    %v42 = vld [vmem:[%s0 + $0x48] sm:$0xff]
    %v43 = vld [vmem:[%s0 + $0x50] sm:$0xff]
    %v44 = vld [vmem:[%s0 + $0x58] sm:$0xff]
    %v45 = vld [vmem:[%s0 + $0x60] sm:$0xff]
    %v46 = vld [vmem:[%s0 + $0x68] sm:$0xff]
    %v47 = vld [vmem:[%s0 + $0x70] sm:$0xff]
    %v48 = vld [vmem:[%s0 + $0x78] sm:$0xff]
    %v49 = vld [vmem:[%s1] sm:$0xff]
    %v50 = vld [vmem:[%s1 + $0x8] sm:$0xff]
    %v51 = vld [vmem:[%s1 + $0x10] sm:$0xff]
    %v52 = vld [vmem:[%s1 + $0x18] sm:$0xff]
    %v53 = vld [vmem:[%s2] sm:$0x1]
    %v55 = vlaneseq
    %v56 = vshrl.u32 %v55, 7
    %v57 = vsub.s32 0, %v56
    %v58 = vrot.slane %v53, %v57
    %vm60 = vcmask 261120
    %v62 = vsel %vm60, %v33, 0
    %v65 = vsel %vm60, %v34, 0
    %v68 = vsel %vm60, %v35, 0
    %v71 = vsel %vm60, %v36, 0
    %v74 = vsel %vm60, %v37, 0
    %v77 = vsel %vm60, %v38, 0
    %v80 = vsel %vm60, %v39, 0
    %v83 = vsel %vm60, %v40, 0
    %v86 = vsel %vm60, %v41, 0
    %v89 = vsel %vm60, %v42, 0
    %v92 = vsel %vm60, %v43, 0
    %v95 = vsel %vm60, %v44, 0
    %v98 = vsel %vm60, %v45, 0
    %v101 = vsel %vm60, %v46, 0
    %v104 = vsel %vm60, %v47, 0
    %v107 = vsel %vm60, %v48, 0
    %109 = vmatprep.subr.mxu0 0.0
    %110 = vmatpush1.msra.mxu0 %v49
    %111 = vmatprep.subr.mxu0 0.0
    %112 = vmatpush1.msra.mxu0 %v50
    %113 = vmatprep.subr.mxu0 0.0
    %114 = vmatpush1.msra.mxu0 %v51
    %115 = vmatprep.subr.mxu0 0.0
    %116 = vmatpush1.msra.mxu0 %v52
    %117 = vmatprep.subr.mxu0 0.0
    %118 = vmatpush1.msra.mxu0 0.0
    %119 = vmatprep.subr.mxu0 0.0
    %120 = vmatpush1.msra.mxu0 0.0
    %121 = vmatprep.subr.mxu0 0.0
    %122 = vmatpush1.msra.mxu0 0.0
    %123 = vmatprep.subr.mxu0 0.0
    %124 = vmatpush1.msra.mxu0 0.0
    %125 = vmatprep.subr.mxu0 0.0
    %126 = vmatpush1.msra.mxu0 0.0
    %127 = vmatprep.subr.mxu0 0.0
    %128 = vmatpush1.msra.mxu0 0.0
    %129 = vmatprep.subr.mxu0 0.0
    %130 = vmatpush1.msra.mxu0 0.0
    %131 = vmatprep.subr.mxu0 0.0
    %132 = vmatpush1.msra.mxu0 0.0
    %133 = vmatprep.subr.mxu0 0.0
    %134 = vmatpush1.msra.mxu0 0.0
    %135 = vmatprep.subr.mxu0 0.0
    %136 = vmatpush1.msra.mxu0 0.0
    %137 = vmatprep.subr.mxu0 0.0
    %138 = vmatpush1.msra.mxu0 0.0
    %139 = vmatprep.subr.mxu0 0.0
    %140 = vmatpush1.msra.mxu0 0.0
    %141 = vmatprep.subr.mxu0 0.0
    %142 = vmatpush1.msra.mxu0 0.0
    %143 = vmatprep.subr.mxu0 0.0
    %144 = vmatpush1.msra.mxu0 0.0
    %145 = vmatprep.subr.mxu0 0.0
    %146 = vmatpush1.msra.mxu0 0.0
    %147 = vmatprep.subr.mxu0 0.0
    %148 = vmatpush1.msra.mxu0 0.0
    %149 = vmatprep.subr.mxu0 0.0
    %150 = vmatpush1.msra.mxu0 0.0
    %151 = vmatprep.subr.mxu0 0.0
    %152 = vmatpush1.msra.mxu0 0.0
    %153 = vmatprep.subr.mxu0 0.0
    %154 = vmatpush1.msra.mxu0 0.0
    %155 = vmatprep.subr.mxu0 0.0
    %156 = vmatpush1.msra.mxu0 0.0
    %157 = vmatprep.subr.mxu0 0.0
    %158 = vmatpush1.msra.mxu0 0.0
    %159 = vmatprep.subr.mxu0 0.0
    %160 = vmatpush1.msra.mxu0 0.0
    %161 = vmatprep.subr.mxu0 0.0
    %162 = vmatpush1.msra.mxu0 0.0
    %163 = vmatprep.subr.mxu0 0.0
    %164 = vmatpush1.msra.mxu0 0.0
    %165 = vmatprep.subr.mxu0 0.0
    %166 = vmatpush1.msra.mxu0 0.0
    %167 = vmatprep.subr.mxu0 0.0
    %168 = vmatpush1.msra.mxu0 0.0
    %169 = vmatprep.subr.mxu0 0.0
    %170 = vmatpush1.msra.mxu0 0.0
    %171 = vmatprep.subr.mxu0 0.0
    %172 = vmatpush1.msra.mxu0 0.0
    %173 = vmatprep.mubr.f32.mxu0 0.0
    %174 = vmatmul.mubr.f32.gmra.mrb[0].mxu0 %v62
    %v175 = vpop.f32.mrb[0].mxu0
    %v176 = vadd.f32 %v58, %v175
    %v177 = vpop.f32.mrb[0].mxu0
    %178 = vmatprep.mubr.f32.mxu0 0.0
    %179 = vmatmul.mubr.f32.gmra.mrb[0].mxu0 %v65
    %v180 = vpop.f32.mrb[0].mxu0
    %v181 = vadd.f32 %v58, %v180
    %v182 = vpop.f32.mrb[0].mxu0
    %183 = vmatprep.mubr.f32.mxu0 0.0
    %184 = vmatmul.mubr.f32.gmra.mrb[0].mxu0 %v68
    %v185 = vpop.f32.mrb[0].mxu0
    %v186 = vadd.f32 %v58, %v185
    %v187 = vpop.f32.mrb[0].mxu0
    %188 = vmatprep.mubr.f32.mxu0 0.0
    %189 = vmatmul.mubr.f32.gmra.mrb[0].mxu0 %v71
    %v190 = vpop.f32.mrb[0].mxu0
    %v191 = vadd.f32 %v58, %v190
    %v192 = vpop.f32.mrb[0].mxu0
    %193 = vmatprep.mubr.f32.mxu0 0.0
    %194 = vmatmul.mubr.f32.gmra.mrb[0].mxu0 %v74
    %v195 = vpop.f32.mrb[0].mxu0
    %v196 = vadd.f32 %v58, %v195
    %v197 = vpop.f32.mrb[0].mxu0
    %198 = vmatprep.mubr.f32.mxu0 0.0
    %199 = vmatmul.mubr.f32.gmra.mrb[0].mxu0 %v77
    %v200 = vpop.f32.mrb[0].mxu0
    %v201 = vadd.f32 %v58, %v200
    %v202 = vpop.f32.mrb[0].mxu0
    %203 = vmatprep.mubr.f32.mxu0 0.0
    %204 = vmatmul.mubr.f32.gmra.mrb[0].mxu0 %v80
    %v205 = vpop.f32.mrb[0].mxu0
    %v206 = vadd.f32 %v58, %v205
    %v207 = vpop.f32.mrb[0].mxu0
    %208 = vmatprep.mubr.f32.mxu0 0.0
    %209 = vmatmul.mubr.f32.gmra.mrb[0].mxu0 %v83
    %v210 = vpop.f32.mrb[0].mxu0
    %v211 = vadd.f32 %v58, %v210
    %v212 = vpop.f32.mrb[0].mxu0
    %213 = vmatprep.mubr.f32.mxu0 0.0
    %214 = vmatmul.mubr.f32.gmra.mrb[0].mxu0 %v86
    %v215 = vpop.f32.mrb[0].mxu0
    %v216 = vadd.f32 %v58, %v215
    %v217 = vpop.f32.mrb[0].mxu0
    %218 = vmatprep.mubr.f32.mxu0 0.0
    %219 = vmatmul.mubr.f32.gmra.mrb[0].mxu0 %v89
    %v220 = vpop.f32.mrb[0].mxu0
    %v221 = vadd.f32 %v58, %v220
    %v222 = vpop.f32.mrb[0].mxu0
    %223 = vmatprep.mubr.f32.mxu0 0.0
    %224 = vmatmul.mubr.f32.gmra.mrb[0].mxu0 %v92
    %v225 = vpop.f32.mrb[0].mxu0
    %v226 = vadd.f32 %v58, %v225
    %v227 = vpop.f32.mrb[0].mxu0
    %228 = vmatprep.mubr.f32.mxu0 0.0
    %229 = vmatmul.mubr.f32.gmra.mrb[0].mxu0 %v95
    %v230 = vpop.f32.mrb[0].mxu0
    %v231 = vadd.f32 %v58, %v230
    %v232 = vpop.f32.mrb[0].mxu0
    %233 = vmatprep.mubr.f32.mxu0 0.0
    %234 = vmatmul.mubr.f32.gmra.mrb[0].mxu0 %v98
    %v235 = vpop.f32.mrb[0].mxu0
    %v236 = vadd.f32 %v58, %v235
    %v237 = vpop.f32.mrb[0].mxu0
    %238 = vmatprep.mubr.f32.mxu0 0.0
    %239 = vmatmul.mubr.f32.gmra.mrb[0].mxu0 %v101
    %v240 = vpop.f32.mrb[0].mxu0
    %v241 = vadd.f32 %v58, %v240
    %v242 = vpop.f32.mrb[0].mxu0
    %243 = vmatprep.mubr.f32.mxu0 0.0
    %244 = vmatmul.mubr.f32.gmra.mrb[0].mxu0 %v104
    %v245 = vpop.f32.mrb[0].mxu0
    %v246 = vadd.f32 %v58, %v245
    %v247 = vpop.f32.mrb[0].mxu0
    %248 = vmatprep.mubr.f32.mxu0 0.0
    %249 = vmatmul.mubr.f32.gmra.mrb[0].mxu0 %v107
    %v250 = vpop.f32.mrb[0].mxu0
    %v251 = vadd.f32 %v58, %v250
    %v252 = vpop.f32.mrb[0].mxu0
    %253 = vdwg.mxu0
    %v254 = vmax.f32 %v176, 0.0
    %v255 = vmax.f32 %v181, 0.0
    %v256 = vmax.f32 %v186, 0.0
    %v257 = vmax.f32 %v191, 0.0
    %v258 = vmax.f32 %v196, 0.0
    %v259 = vmax.f32 %v201, 0.0
    %v260 = vmax.f32 %v206, 0.0
    %v261 = vmax.f32 %v211, 0.0
    %v262 = vmax.f32 %v216, 0.0
    %v263 = vmax.f32 %v221, 0.0
    %v264 = vmax.f32 %v226, 0.0
    %v265 = vmax.f32 %v231, 0.0
    %v266 = vmax.f32 %v236, 0.0
    %v267 = vmax.f32 %v241, 0.0
    %v268 = vmax.f32 %v246, 0.0
    %v269 = vmax.f32 %v251, 0.0
    %vm270 = vcmask 130048
    %271 = vst.msk [vmem:[#allocation2] sm:$0xff] %vm270, 0.0
    %vm272 = vcmask 123904
    %273 = vst.msk [vmem:[#allocation2 + $0x8] sm:$0x3] %vm272, 0.0
    %274 = vst.msk [vmem:[#allocation2 + $0x10] sm:$0xff] %vm270, 0.0
    %275 = vst.msk [vmem:[#allocation2 + $0x18] sm:$0x3] %vm272, 0.0
    %276 = vst.msk [vmem:[#allocation2 + $0x20] sm:$0xff] %vm270, 0.0
    %277 = vst.msk [vmem:[#allocation2 + $0x28] sm:$0x3] %vm272, 0.0
    %278 = vst.msk [vmem:[#allocation2 + $0x30] sm:$0xff] %vm270, 0.0
    %279 = vst.msk [vmem:[#allocation2 + $0x38] sm:$0x3] %vm272, 0.0
    %280 = vst.msk [vmem:[#allocation2 + $0x40] sm:$0xff] %vm270, 0.0
    %281 = vst.msk [vmem:[#allocation2 + $0x48] sm:$0x3] %vm272, 0.0
    %282 = vst.msk [vmem:[#allocation2 + $0x50] sm:$0xff] %vm270, 0.0
    %283 = vst.msk [vmem:[#allocation2 + $0x58] sm:$0x3] %vm272, 0.0
    %284 = vst.msk [vmem:[#allocation2 + $0x60] sm:$0xff] %vm270, 0.0
    %285 = vst.msk [vmem:[#allocation2 + $0x68] sm:$0x3] %vm272, 0.0
    %286 = vst.msk [vmem:[#allocation2 + $0x70] sm:$0xff] %vm270, 0.0
    %287 = vst.msk [vmem:[#allocation2 + $0x78] sm:$0x3] %vm272, 0.0
    %288 = vst.msk [vmem:[#allocation2 + $0x80] sm:$0xff] %vm270, 0.0
    %289 = vst.msk [vmem:[#allocation2 + $0x88] sm:$0x3] %vm272, 0.0
    %290 = vst.msk [vmem:[#allocation2 + $0x90] sm:$0xff] %vm270, 0.0
    %291 = vst.msk [vmem:[#allocation2 + $0x98] sm:$0x3] %vm272, 0.0
    %292 = vst.msk [vmem:[#allocation2 + $0xa0] sm:$0xff] %vm270, 0.0
    %293 = vst.msk [vmem:[#allocation2 + $0xa8] sm:$0x3] %vm272, 0.0
    %294 = vst.msk [vmem:[#allocation2 + $0xb0] sm:$0xff] %vm270, 0.0
    %295 = vst.msk [vmem:[#allocation2 + $0xb8] sm:$0x3] %vm272, 0.0
    %296 = vst.msk [vmem:[#allocation2 + $0xc0] sm:$0xff] %vm270, 0.0
    %297 = vst.msk [vmem:[#allocation2 + $0xc8] sm:$0x3] %vm272, 0.0
    %298 = vst.msk [vmem:[#allocation2 + $0xd0] sm:$0xff] %vm270, 0.0
    %299 = vst.msk [vmem:[#allocation2 + $0xd8] sm:$0x3] %vm272, 0.0
    %300 = vst.msk [vmem:[#allocation2 + $0xe0] sm:$0xff] %vm270, 0.0
    %301 = vst.msk [vmem:[#allocation2 + $0xe8] sm:$0x3] %vm272, 0.0
    %302 = vst.msk [vmem:[#allocation2 + $0xf0] sm:$0xff] %vm270, 0.0
    %303 = vst.msk [vmem:[#allocation2 + $0xf8] sm:$0x3] %vm272, 0.0
    %304 = vst.msk [vmem:[#allocation2 + $0x100] sm:$0xff] %vm270, 0.0
    %305 = vst.msk [vmem:[#allocation2 + $0x108] sm:$0x3] %vm272, 0.0
    %306 = vst.msk [vmem:[#allocation2 + $0x110] sm:$0xff] %vm270, 0.0
    %307 = vst.msk [vmem:[#allocation2 + $0x118] sm:$0x3] %vm272, 0.0
    %308 = vst.msk [vmem:[#allocation2 + $0x120] sm:$0xff] %vm270, 0.0
    %309 = vst.msk [vmem:[#allocation2 + $0x128] sm:$0x3] %vm272, 0.0
    %310 = vst.msk [vmem:[#allocation2 + $0x130] sm:$0xff] %vm270, 0.0
    %311 = vst.msk [vmem:[#allocation2 + $0x138] sm:$0x3] %vm272, 0.0
    %s312 = scalar_lea.vmem [#allocation2], 16
    %313 = vst.msk [vmem:[%s312 + $0x1] sm:$0xff] %vm270, %v254
    %314 = vst.msk [vmem:[%s312 + $0x11] sm:$0xff] %vm270, %v255
    %315 = vst.msk [vmem:[%s312 + $0x21] sm:$0xff] %vm270, %v256
    %316 = vst.msk [vmem:[%s312 + $0x31] sm:$0xff] %vm270, %v257
    %317 = vst.msk [vmem:[%s312 + $0x41] sm:$0xff] %vm270, %v258
    %318 = vst.msk [vmem:[%s312 + $0x51] sm:$0xff] %vm270, %v259
    %319 = vst.msk [vmem:[%s312 + $0x61] sm:$0xff] %vm270, %v260
    %320 = vst.msk [vmem:[%s312 + $0x71] sm:$0xff] %vm270, %v261
    %321 = vst.msk [vmem:[%s312 + $0xa1] sm:$0xff] %vm270, %v262
    %322 = vst.msk [vmem:[%s312 + $0xb1] sm:$0xff] %vm270, %v263
    %323 = vst.msk [vmem:[%s312 + $0xc1] sm:$0xff] %vm270, %v264
    %324 = vst.msk [vmem:[%s312 + $0xd1] sm:$0xff] %vm270, %v265
    %325 = vst.msk [vmem:[%s312 + $0xe1] sm:$0xff] %vm270, %v266
    %326 = vst.msk [vmem:[%s312 + $0xf1] sm:$0xff] %vm270, %v267
    %327 = vst.msk [vmem:[%s312 + $0x101] sm:$0xff] %vm270, %v268
    %328 = vst.msk [vmem:[%s312 + $0x111] sm:$0xff] %vm270, %v269
    %329 = vst [vmem:[#allocation3] sm:$0xff] 0.0
    %330 = vst [vmem:[#allocation3 + $0x8] sm:$0xff] 0.0
    %331 = vst [vmem:[#allocation3 + $0x10] sm:$0xff] 0.0
    %332 = vst [vmem:[#allocation3 + $0x18] sm:$0xff] 0.0
    %333 = vst [vmem:[#allocation3 + $0x20] sm:$0xff] 0.0
    %334 = vst [vmem:[#allocation3 + $0x28] sm:$0xff] 0.0
    %335 = vst [vmem:[#allocation3 + $0x30] sm:$0xff] 0.0
    %336 = vst [vmem:[#allocation3 + $0x38] sm:$0xff] 0.0
    %337 = vst [vmem:[#allocation3 + $0x40] sm:$0xff] 0.0
    %338 = vst [vmem:[#allocation3 + $0x48] sm:$0xff] 0.0
    %339 = vst [vmem:[#allocation3 + $0x50] sm:$0xff] 0.0
    %340 = vst [vmem:[#allocation3 + $0x58] sm:$0xff] 0.0
    %341 = vst [vmem:[#allocation3 + $0x60] sm:$0xff] 0.0
    %342 = vst [vmem:[#allocation3 + $0x68] sm:$0xff] 0.0
    %343 = vst [vmem:[#allocation3 + $0x70] sm:$0xff] 0.0
    %344 = vst [vmem:[#allocation3 + $0x78] sm:$0xff] 0.0
    %345 = vst [vmem:[#allocation3 + $0x80] sm:$0xff] 0.0
    %346 = vst [vmem:[#allocation3 + $0x88] sm:$0xff] 0.0
    %347 = vst [vmem:[#allocation3 + $0x90] sm:$0xff] 0.0
    %348 = vst [vmem:[#allocation3 + $0x98] sm:$0xff] 0.0
    %349 = vst [vmem:[#allocation3 + $0xa0] sm:$0xff] 0.0
    %350 = vst [vmem:[#allocation3 + $0xa8] sm:$0xff] 0.0
    %351 = vst [vmem:[#allocation3 + $0xb0] sm:$0xff] 0.0
    %352 = vst [vmem:[#allocation3 + $0xb8] sm:$0xff] 0.0
    %353 = vst [vmem:[#allocation3 + $0xc0] sm:$0xff] 0.0
    %354 = vst [vmem:[#allocation3 + $0xc8] sm:$0xff] 0.0
    %355 = vst [vmem:[#allocation3 + $0xd0] sm:$0xff] 0.0
    %356 = vst [vmem:[#allocation3 + $0xd8] sm:$0xff] 0.0
    %357 = vst [vmem:[#allocation3 + $0xe0] sm:$0xff] 0.0
    %358 = vst [vmem:[#allocation3 + $0xe8] sm:$0xff] 0.0
    %359 = vst [vmem:[#allocation3 + $0xf0] sm:$0xff] 0.0
    %360 = vst [vmem:[#allocation3 + $0xf8] sm:$0xff] 0.0
    %361 = vst [vmem:[#allocation3 + $0x100] sm:$0xff] 0.0
    %362 = vst [vmem:[#allocation3 + $0x108] sm:$0xff] 0.0
    %363 = vst [vmem:[#allocation3 + $0x110] sm:$0xff] 0.0
    %364 = vst [vmem:[#allocation3 + $0x118] sm:$0xff] 0.0
    %365 = vst [vmem:[#allocation3 + $0x120] sm:$0xff] 0.0
    %366 = vst [vmem:[#allocation3 + $0x128] sm:$0xff] 0.0
    %367 = vst [vmem:[#allocation3 + $0x130] sm:$0xff] 0.0
    %368 = vst [vmem:[#allocation3 + $0x138] sm:$0xff] 0.0
    %369 = vst [vmem:[#allocation3 + $0x140] sm:$0xff] 0.0
    %370 = vst [vmem:[#allocation3 + $0x148] sm:$0xff] 0.0
    %371 = vst [vmem:[#allocation3 + $0x150] sm:$0xff] 0.0
    %372 = vst [vmem:[#allocation3 + $0x158] sm:$0xff] 0.0
    %373 = vst [vmem:[#allocation3 + $0x160] sm:$0xff] 0.0
    %374 = vst [vmem:[#allocation3 + $0x168] sm:$0xff] 0.0
    %375 = vst [vmem:[#allocation3 + $0x170] sm:$0xff] 0.0
    %376 = vst [vmem:[#allocation3 + $0x178] sm:$0xff] 0.0
    %377 = vst [vmem:[#allocation3 + $0x180] sm:$0xff] 0.0
    %378 = vst [vmem:[#allocation3 + $0x188] sm:$0xff] 0.0
    %379 = vst [vmem:[#allocation3 + $0x190] sm:$0xff] 0.0
    %380 = vst [vmem:[#allocation3 + $0x198] sm:$0xff] 0.0
    %381 = vst [vmem:[#allocation3 + $0x1a0] sm:$0xff] 0.0
    %382 = vst [vmem:[#allocation3 + $0x1a8] sm:$0xff] 0.0
    %383 = vst [vmem:[#allocation3 + $0x1b0] sm:$0xff] 0.0
    %384 = vst [vmem:[#allocation3 + $0x1b8] sm:$0xff] 0.0
    %385 = vst [vmem:[#allocation3 + $0x1c0] sm:$0xff] 0.0
    %386 = vst [vmem:[#allocation3 + $0x1c8] sm:$0xff] 0.0
    %387 = vst [vmem:[#allocation3 + $0x1d0] sm:$0xff] 0.0
    %388 = vst [vmem:[#allocation3 + $0x1d8] sm:$0xff] 0.0
    %389 = vst [vmem:[#allocation3 + $0x1e0] sm:$0xff] 0.0
    %390 = vst [vmem:[#allocation3 + $0x1e8] sm:$0xff] 0.0
    %391 = vst [vmem:[#allocation3 + $0x1f0] sm:$0xff] 0.0
    %392 = vst [vmem:[#allocation3 + $0x1f8] sm:$0xff] 0.0
    %393 = vst [vmem:[#allocation3 + $0x200] sm:$0xff] 0.0
    %394 = vst [vmem:[#allocation3 + $0x208] sm:$0xff] 0.0
    %395 = vst [vmem:[#allocation3 + $0x210] sm:$0xff] 0.0
    %396 = vst [vmem:[#allocation3 + $0x218] sm:$0xff] 0.0
    %397 = vst [vmem:[#allocation3 + $0x220] sm:$0xff] 0.0
    %398 = vst [vmem:[#allocation3 + $0x228] sm:$0xff] 0.0
    %399 = vst [vmem:[#allocation3 + $0x230] sm:$0xff] 0.0
    %400 = vst [vmem:[#allocation3 + $0x238] sm:$0xff] 0.0
    %401 = vst [vmem:[#allocation3 + $0x240] sm:$0xff] 0.0
    %402 = vst [vmem:[#allocation3 + $0x248] sm:$0xff] 0.0
    %403 = vst [vmem:[#allocation3 + $0x250] sm:$0xff] 0.0
    %404 = vst [vmem:[#allocation3 + $0x258] sm:$0xff] 0.0
    %405 = vst [vmem:[#allocation3 + $0x260] sm:$0xff] 0.0
    %406 = vst [vmem:[#allocation3 + $0x268] sm:$0xff] 0.0
    %407 = vst [vmem:[#allocation3 + $0x270] sm:$0xff] 0.0
    %408 = vst [vmem:[#allocation3 + $0x278] sm:$0xff] 0.0
    %409 = vst [vmem:[#allocation3 + $0x280] sm:$0xff] 0.0
    %410 = vst [vmem:[#allocation3 + $0x288] sm:$0xff] 0.0
    %411 = vst [vmem:[#allocation3 + $0x290] sm:$0xff] 0.0
    %412 = vst [vmem:[#allocation3 + $0x298] sm:$0xff] 0.0
    %413 = vst [vmem:[#allocation3 + $0x2a0] sm:$0xff] 0.0
    %414 = vst [vmem:[#allocation3 + $0x2a8] sm:$0xff] 0.0
    %415 = vst [vmem:[#allocation3 + $0x2b0] sm:$0xff] 0.0
    %416 = vst [vmem:[#allocation3 + $0x2b8] sm:$0xff] 0.0
    %417 = vst [vmem:[#allocation3 + $0x2c0] sm:$0xff] 0.0
    %418 = vst [vmem:[#allocation3 + $0x2c8] sm:$0xff] 0.0
    %419 = vst [vmem:[#allocation3 + $0x2d0] sm:$0xff] 0.0
    %420 = vst [vmem:[#allocation3 + $0x2d8] sm:$0xff] 0.0
    %421 = vst [vmem:[#allocation3 + $0x2e0] sm:$0xff] 0.0
    %422 = vst [vmem:[#allocation3 + $0x2e8] sm:$0xff] 0.0
    %423 = vst [vmem:[#allocation3 + $0x2f0] sm:$0xff] 0.0
    %424 = vst [vmem:[#allocation3 + $0x2f8] sm:$0xff] 0.0
    %425 = vst [vmem:[#allocation3 + $0x300] sm:$0xff] 0.0
    %426 = vst [vmem:[#allocation3 + $0x308] sm:$0xff] 0.0
    %427 = vst [vmem:[#allocation3 + $0x310] sm:$0xff] 0.0
    %428 = vst [vmem:[#allocation3 + $0x318] sm:$0xff] 0.0
    %429 = vst [vmem:[#allocation3 + $0x320] sm:$0xff] 0.0
    %430 = vst [vmem:[#allocation3 + $0x328] sm:$0xff] 0.0
    %431 = vst [vmem:[#allocation3 + $0x330] sm:$0xff] 0.0
    %432 = vst [vmem:[#allocation3 + $0x338] sm:$0xff] 0.0
    %433 = vst [vmem:[#allocation3 + $0x340] sm:$0xff] 0.0
    %434 = vst [vmem:[#allocation3 + $0x348] sm:$0xff] 0.0
    %435 = vst [vmem:[#allocation3 + $0x350] sm:$0xff] 0.0
    %436 = vst [vmem:[#allocation3 + $0x358] sm:$0xff] 0.0
    %437 = vst [vmem:[#allocation3 + $0x360] sm:$0xff] 0.0
    %438 = vst [vmem:[#allocation3 + $0x368] sm:$0xff] 0.0
    %439 = vst [vmem:[#allocation3 + $0x370] sm:$0xff] 0.0
    %440 = vst [vmem:[#allocation3 + $0x378] sm:$0xff] 0.0
    %441 = vst [vmem:[#allocation3 + $0x380] sm:$0xff] 0.0
    %442 = vst [vmem:[#allocation3 + $0x388] sm:$0xff] 0.0
    %443 = vst [vmem:[#allocation3 + $0x390] sm:$0xff] 0.0
    %444 = vst [vmem:[#allocation3 + $0x398] sm:$0xff] 0.0
    %445 = vst [vmem:[#allocation3 + $0x3a0] sm:$0xff] 0.0
    %446 = vst [vmem:[#allocation3 + $0x3a8] sm:$0xff] 0.0
    %447 = vst [vmem:[#allocation3 + $0x3b0] sm:$0xff] 0.0
    %448 = vst [vmem:[#allocation3 + $0x3b8] sm:$0xff] 0.0
    %449 = vst [vmem:[#allocation3 + $0x3c0] sm:$0xff] 0.0
    %450 = vst [vmem:[#allocation3 + $0x3c8] sm:$0xff] 0.0
    %451 = vst [vmem:[#allocation3 + $0x3d0] sm:$0xff] 0.0
    %452 = vst [vmem:[#allocation3 + $0x3d8] sm:$0xff] 0.0
    %453 = vst [vmem:[#allocation3 + $0x3e0] sm:$0xff] 0.0
    %454 = vst [vmem:[#allocation3 + $0x3e8] sm:$0xff] 0.0
    %455 = vst [vmem:[#allocation3 + $0x3f0] sm:$0xff] 0.0
    %456 = vst [vmem:[#allocation3 + $0x3f8] sm:$0xff] 0.0
    %457 = vst [vmem:[#allocation3 + $0x400] sm:$0xff] 0.0
    %458 = vst [vmem:[#allocation3 + $0x408] sm:$0xff] 0.0
    %459 = vst [vmem:[#allocation3 + $0x410] sm:$0xff] 0.0
    %460 = vst [vmem:[#allocation3 + $0x418] sm:$0xff] 0.0
    %461 = vst [vmem:[#allocation3 + $0x420] sm:$0xff] 0.0
    %462 = vst [vmem:[#allocation3 + $0x428] sm:$0xff] 0.0
    %463 = vst [vmem:[#allocation3 + $0x430] sm:$0xff] 0.0
    %464 = vst [vmem:[#allocation3 + $0x438] sm:$0xff] 0.0
    %465 = vst [vmem:[#allocation3 + $0x440] sm:$0xff] 0.0
    %466 = vst [vmem:[#allocation3 + $0x448] sm:$0xff] 0.0
    %467 = vst [vmem:[#allocation3 + $0x450] sm:$0xff] 0.0
    %468 = vst [vmem:[#allocation3 + $0x458] sm:$0xff] 0.0
    %469 = vst [vmem:[#allocation3 + $0x460] sm:$0xff] 0.0
    %470 = vst [vmem:[#allocation3 + $0x468] sm:$0xff] 0.0
    %471 = vst [vmem:[#allocation3 + $0x470] sm:$0xff] 0.0
    %472 = vst [vmem:[#allocation3 + $0x478] sm:$0xff] 0.0
    %v473 = vld [vmem:[#allocation2] sm:$0xff]
    %v474 = vld [vmem:[#allocation2 + $0x10] sm:$0xff]
    %v475 = vld [vmem:[#allocation2 + $0x20] sm:$0xff]
    %v476 = vld [vmem:[#allocation2 + $0x30] sm:$0xff]
    %v477 = vld [vmem:[#allocation2 + $0x40] sm:$0xff]
    %v478 = vld [vmem:[#allocation2 + $0x50] sm:$0xff]
    %v479 = vld [vmem:[#allocation2 + $0x60] sm:$0xff]
    %v480 = vld [vmem:[#allocation2 + $0x70] sm:$0xff]
    %v481 = vld [vmem:[#allocation2 + $0xa0] sm:$0xff]
    %v482 = vld [vmem:[#allocation2 + $0xb0] sm:$0xff]
    %v483 = vld [vmem:[#allocation2 + $0xc0] sm:$0xff]
    %v484 = vld [vmem:[#allocation2 + $0xd0] sm:$0xff]
    %v485 = vld [vmem:[#allocation2 + $0xe0] sm:$0xff]
    %v486 = vld [vmem:[#allocation2 + $0xf0] sm:$0xff]
    %v487 = vld [vmem:[#allocation2 + $0x100] sm:$0xff]
    %v488 = vld [vmem:[#allocation2 + $0x110] sm:$0xff]
    %489 = vst.msk [vmem:[#allocation3] sm:$0xff] %vm270, %v473
    %490 = vst.msk [vmem:[#allocation3 + $0x48] sm:$0xff] %vm270, %v474
    %491 = vst.msk [vmem:[#allocation3 + $0x90] sm:$0xff] %vm270, %v475
    %492 = vst.msk [vmem:[#allocation3 + $0xd8] sm:$0xff] %vm270, %v476
    %493 = vst.msk [vmem:[#allocation3 + $0x120] sm:$0xff] %vm270, %v477
    %494 = vst.msk [vmem:[#allocation3 + $0x168] sm:$0xff] %vm270, %v478
    %495 = vst.msk [vmem:[#allocation3 + $0x1b0] sm:$0xff] %vm270, %v479
    %496 = vst.msk [vmem:[#allocation3 + $0x1f8] sm:$0xff] %vm270, %v480
    %497 = vst.msk [vmem:[#allocation3 + $0x240] sm:$0xff] %vm270, %v481
    %498 = vst.msk [vmem:[#allocation3 + $0x288] sm:$0xff] %vm270, %v482
    %499 = vst.msk [vmem:[#allocation3 + $0x2d0] sm:$0xff] %vm270, %v483
    %500 = vst.msk [vmem:[#allocation3 + $0x318] sm:$0xff] %vm270, %v484
    %501 = vst.msk [vmem:[#allocation3 + $0x360] sm:$0xff] %vm270, %v485
    %502 = vst.msk [vmem:[#allocation3 + $0x3a8] sm:$0xff] %vm270, %v486
    %503 = vst.msk [vmem:[#allocation3 + $0x3f0] sm:$0xff] %vm270, %v487
    %504 = vst.msk [vmem:[#allocation3 + $0x438] sm:$0xff] %vm270, %v488
    %v505 = vld [vmem:[#allocation2 + $0x1] sm:$0xff]
    %v506 = vld [vmem:[#allocation2 + $0x11] sm:$0xff]
    %v507 = vld [vmem:[#allocation2 + $0x21] sm:$0xff]
    %v508 = vld [vmem:[#allocation2 + $0x31] sm:$0xff]
    %v509 = vld [vmem:[#allocation2 + $0x41] sm:$0xff]
    %v510 = vld [vmem:[#allocation2 + $0x51] sm:$0xff]
    %v511 = vld [vmem:[#allocation2 + $0x61] sm:$0xff]
    %v512 = vld [vmem:[#allocation2 + $0x71] sm:$0xff]
    %v513 = vld [vmem:[#allocation2 + $0xa1] sm:$0xff]
    %v514 = vld [vmem:[#allocation2 + $0xb1] sm:$0xff]
    %v515 = vld [vmem:[#allocation2 + $0xc1] sm:$0xff]
    %v516 = vld [vmem:[#allocation2 + $0xd1] sm:$0xff]
    %v517 = vld [vmem:[#allocation2 + $0xe1] sm:$0xff]
    %v518 = vld [vmem:[#allocation2 + $0xf1] sm:$0xff]
    %v519 = vld [vmem:[#allocation2 + $0x101] sm:$0xff]
    %v520 = vld [vmem:[#allocation2 + $0x111] sm:$0xff]
    %521 = vst.msk [vmem:[#allocation3 + $0x8] sm:$0xff] %vm270, %v505
    %522 = vst.msk [vmem:[#allocation3 + $0x50] sm:$0xff] %vm270, %v506
    %523 = vst.msk [vmem:[#allocation3 + $0x98] sm:$0xff] %vm270, %v507
    %524 = vst.msk [vmem:[#allocation3 + $0xe0] sm:$0xff] %vm270, %v508
    %525 = vst.msk [vmem:[#allocation3 + $0x128] sm:$0xff] %vm270, %v509
    %526 = vst.msk [vmem:[#allocation3 + $0x170] sm:$0xff] %vm270, %v510
    %527 = vst.msk [vmem:[#allocation3 + $0x1b8] sm:$0xff] %vm270, %v511
    %528 = vst.msk [vmem:[#allocation3 + $0x200] sm:$0xff] %vm270, %v512
    %529 = vst.msk [vmem:[#allocation3 + $0x248] sm:$0xff] %vm270, %v513
    %530 = vst.msk [vmem:[#allocation3 + $0x290] sm:$0xff] %vm270, %v514
    %531 = vst.msk [vmem:[#allocation3 + $0x2d8] sm:$0xff] %vm270, %v515
    %532 = vst.msk [vmem:[#allocation3 + $0x320] sm:$0xff] %vm270, %v516
    %533 = vst.msk [vmem:[#allocation3 + $0x368] sm:$0xff] %vm270, %v517
    %534 = vst.msk [vmem:[#allocation3 + $0x3b0] sm:$0xff] %vm270, %v518
    %535 = vst.msk [vmem:[#allocation3 + $0x3f8] sm:$0xff] %vm270, %v519
    %536 = vst.msk [vmem:[#allocation3 + $0x440] sm:$0xff] %vm270, %v520
    %v537 = vld [vmem:[#allocation2 + $0x2] sm:$0xff]
    %v538 = vld [vmem:[#allocation2 + $0x12] sm:$0xff]
    %v539 = vld [vmem:[#allocation2 + $0x22] sm:$0xff]
    %v540 = vld [vmem:[#allocation2 + $0x32] sm:$0xff]
    %v541 = vld [vmem:[#allocation2 + $0x42] sm:$0xff]
    %v542 = vld [vmem:[#allocation2 + $0x52] sm:$0xff]
    %v543 = vld [vmem:[#allocation2 + $0x62] sm:$0xff]
    %v544 = vld [vmem:[#allocation2 + $0x72] sm:$0xff]
    %v545 = vld [vmem:[#allocation2 + $0xa2] sm:$0xff]
    %v546 = vld [vmem:[#allocation2 + $0xb2] sm:$0xff]
    %v547 = vld [vmem:[#allocation2 + $0xc2] sm:$0xff]
    %v548 = vld [vmem:[#allocation2 + $0xd2] sm:$0xff]
    %v549 = vld [vmem:[#allocation2 + $0xe2] sm:$0xff]
    %v550 = vld [vmem:[#allocation2 + $0xf2] sm:$0xff]
    %v551 = vld [vmem:[#allocation2 + $0x102] sm:$0xff]
    %v552 = vld [vmem:[#allocation2 + $0x112] sm:$0xff]
    %553 = vst.msk [vmem:[#allocation3 + $0x10] sm:$0xff] %vm270, %v537
    %554 = vst.msk [vmem:[#allocation3 + $0x58] sm:$0xff] %vm270, %v538
    %555 = vst.msk [vmem:[#allocation3 + $0xa0] sm:$0xff] %vm270, %v539
    %556 = vst.msk [vmem:[#allocation3 + $0xe8] sm:$0xff] %vm270, %v540
    %557 = vst.msk [vmem:[#allocation3 + $0x130] sm:$0xff] %vm270, %v541
    %558 = vst.msk [vmem:[#allocation3 + $0x178] sm:$0xff] %vm270, %v542
    %559 = vst.msk [vmem:[#allocation3 + $0x1c0] sm:$0xff] %vm270, %v543
    %560 = vst.msk [vmem:[#allocation3 + $0x208] sm:$0xff] %vm270, %v544
    %561 = vst.msk [vmem:[#allocation3 + $0x250] sm:$0xff] %vm270, %v545
    %562 = vst.msk [vmem:[#allocation3 + $0x298] sm:$0xff] %vm270, %v546
    %563 = vst.msk [vmem:[#allocation3 + $0x2e0] sm:$0xff] %vm270, %v547
    %564 = vst.msk [vmem:[#allocation3 + $0x328] sm:$0xff] %vm270, %v548
    %565 = vst.msk [vmem:[#allocation3 + $0x370] sm:$0xff] %vm270, %v549
    %566 = vst.msk [vmem:[#allocation3 + $0x3b8] sm:$0xff] %vm270, %v550
    %567 = vst.msk [vmem:[#allocation3 + $0x400] sm:$0xff] %vm270, %v551
    %568 = vst.msk [vmem:[#allocation3 + $0x448] sm:$0xff] %vm270, %v552
    %v569 = vld [vmem:[%s312] sm:$0xff]
    %v570 = vld [vmem:[%s312 + $0x10] sm:$0xff]
    %v571 = vld [vmem:[%s312 + $0x20] sm:$0xff]
    %v572 = vld [vmem:[%s312 + $0x30] sm:$0xff]
    %v573 = vld [vmem:[%s312 + $0x40] sm:$0xff]
    %v574 = vld [vmem:[%s312 + $0x50] sm:$0xff]
    %v575 = vld [vmem:[%s312 + $0x60] sm:$0xff]
    %v576 = vld [vmem:[%s312 + $0x70] sm:$0xff]
    %v577 = vld [vmem:[%s312 + $0xa0] sm:$0xff]
    %v578 = vld [vmem:[%s312 + $0xb0] sm:$0xff]
    %v579 = vld [vmem:[%s312 + $0xc0] sm:$0xff]
    %v580 = vld [vmem:[%s312 + $0xd0] sm:$0xff]
    %v581 = vld [vmem:[%s312 + $0xe0] sm:$0xff]
    %v582 = vld [vmem:[%s312 + $0xf0] sm:$0xff]
    %v583 = vld [vmem:[%s312 + $0x100] sm:$0xff]
    %v584 = vld [vmem:[%s312 + $0x110] sm:$0xff]
    %585 = vst.msk [vmem:[#allocation3 + $0x18] sm:$0xff] %vm270, %v569
    %586 = vst.msk [vmem:[#allocation3 + $0x60] sm:$0xff] %vm270, %v570
    %587 = vst.msk [vmem:[#allocation3 + $0xa8] sm:$0xff] %vm270, %v571
    %588 = vst.msk [vmem:[#allocation3 + $0xf0] sm:$0xff] %vm270, %v572
    %589 = vst.msk [vmem:[#allocation3 + $0x138] sm:$0xff] %vm270, %v573
    %590 = vst.msk [vmem:[#allocation3 + $0x180] sm:$0xff] %vm270, %v574
    %591 = vst.msk [vmem:[#allocation3 + $0x1c8] sm:$0xff] %vm270, %v575
    %592 = vst.msk [vmem:[#allocation3 + $0x210] sm:$0xff] %vm270, %v576
    %593 = vst.msk [vmem:[#allocation3 + $0x258] sm:$0xff] %vm270, %v577
    %594 = vst.msk [vmem:[#allocation3 + $0x2a0] sm:$0xff] %vm270, %v578
    %595 = vst.msk [vmem:[#allocation3 + $0x2e8] sm:$0xff] %vm270, %v579
    %596 = vst.msk [vmem:[#allocation3 + $0x330] sm:$0xff] %vm270, %v580
    %597 = vst.msk [vmem:[#allocation3 + $0x378] sm:$0xff] %vm270, %v581
    %598 = vst.msk [vmem:[#allocation3 + $0x3c0] sm:$0xff] %vm270, %v582
    %599 = vst.msk [vmem:[#allocation3 + $0x408] sm:$0xff] %vm270, %v583
    %600 = vst.msk [vmem:[#allocation3 + $0x450] sm:$0xff] %vm270, %v584
    %v601 = vld [vmem:[%s312 + $0x1] sm:$0xff]
    %v602 = vld [vmem:[%s312 + $0x11] sm:$0xff]
    %v603 = vld [vmem:[%s312 + $0x21] sm:$0xff]
    %v604 = vld [vmem:[%s312 + $0x31] sm:$0xff]
    %v605 = vld [vmem:[%s312 + $0x41] sm:$0xff]
    %v606 = vld [vmem:[%s312 + $0x51] sm:$0xff]
    %v607 = vld [vmem:[%s312 + $0x61] sm:$0xff]
    %v608 = vld [vmem:[%s312 + $0x71] sm:$0xff]
    %v609 = vld [vmem:[%s312 + $0xa1] sm:$0xff]
    %v610 = vld [vmem:[%s312 + $0xb1] sm:$0xff]
    %v611 = vld [vmem:[%s312 + $0xc1] sm:$0xff]
    %v612 = vld [vmem:[%s312 + $0xd1] sm:$0xff]
    %v613 = vld [vmem:[%s312 + $0xe1] sm:$0xff]
    %v614 = vld [vmem:[%s312 + $0xf1] sm:$0xff]
    %v615 = vld [vmem:[%s312 + $0x101] sm:$0xff]
    %v616 = vld [vmem:[%s312 + $0x111] sm:$0xff]
    %617 = vst.msk [vmem:[#allocation3 + $0x20] sm:$0xff] %vm270, %v601
    %618 = vst.msk [vmem:[#allocation3 + $0x68] sm:$0xff] %vm270, %v602
    %619 = vst.msk [vmem:[#allocation3 + $0xb0] sm:$0xff] %vm270, %v603
    %620 = vst.msk [vmem:[#allocation3 + $0xf8] sm:$0xff] %vm270, %v604
    %621 = vst.msk [vmem:[#allocation3 + $0x140] sm:$0xff] %vm270, %v605
    %622 = vst.msk [vmem:[#allocation3 + $0x188] sm:$0xff] %vm270, %v606
    %623 = vst.msk [vmem:[#allocation3 + $0x1d0] sm:$0xff] %vm270, %v607
    %624 = vst.msk [vmem:[#allocation3 + $0x218] sm:$0xff] %vm270, %v608
    %625 = vst.msk [vmem:[#allocation3 + $0x260] sm:$0xff] %vm270, %v609
    %626 = vst.msk [vmem:[#allocation3 + $0x2a8] sm:$0xff] %vm270, %v610
    %627 = vst.msk [vmem:[#allocation3 + $0x2f0] sm:$0xff] %vm270, %v611
    %628 = vst.msk [vmem:[#allocation3 + $0x338] sm:$0xff] %vm270, %v612
    %629 = vst.msk [vmem:[#allocation3 + $0x380] sm:$0xff] %vm270, %v613
    %630 = vst.msk [vmem:[#allocation3 + $0x3c8] sm:$0xff] %vm270, %v614
    %631 = vst.msk [vmem:[#allocation3 + $0x410] sm:$0xff] %vm270, %v615
    %632 = vst.msk [vmem:[#allocation3 + $0x458] sm:$0xff] %vm270, %v616
    %v633 = vld [vmem:[%s312 + $0x2] sm:$0xff]
    %v634 = vld [vmem:[%s312 + $0x12] sm:$0xff]
    %v635 = vld [vmem:[%s312 + $0x22] sm:$0xff]
    %v636 = vld [vmem:[%s312 + $0x32] sm:$0xff]
    %v637 = vld [vmem:[%s312 + $0x42] sm:$0xff]
    %v638 = vld [vmem:[%s312 + $0x52] sm:$0xff]
    %v639 = vld [vmem:[%s312 + $0x62] sm:$0xff]
    %v640 = vld [vmem:[%s312 + $0x72] sm:$0xff]
    %v641 = vld [vmem:[%s312 + $0xa2] sm:$0xff]
    %v642 = vld [vmem:[%s312 + $0xb2] sm:$0xff]
    %v643 = vld [vmem:[%s312 + $0xc2] sm:$0xff]
    %v644 = vld [vmem:[%s312 + $0xd2] sm:$0xff]
    %v645 = vld [vmem:[%s312 + $0xe2] sm:$0xff]
    %v646 = vld [vmem:[%s312 + $0xf2] sm:$0xff]
    %v647 = vld [vmem:[%s312 + $0x102] sm:$0xff]
    %v648 = vld [vmem:[%s312 + $0x112] sm:$0xff]
    %649 = vst.msk [vmem:[#allocation3 + $0x28] sm:$0xff] %vm270, %v633
    %650 = vst.msk [vmem:[#allocation3 + $0x70] sm:$0xff] %vm270, %v634
    %651 = vst.msk [vmem:[#allocation3 + $0xb8] sm:$0xff] %vm270, %v635
    %652 = vst.msk [vmem:[#allocation3 + $0x100] sm:$0xff] %vm270, %v636
    %653 = vst.msk [vmem:[#allocation3 + $0x148] sm:$0xff] %vm270, %v637
    %654 = vst.msk [vmem:[#allocation3 + $0x190] sm:$0xff] %vm270, %v638
    %655 = vst.msk [vmem:[#allocation3 + $0x1d8] sm:$0xff] %vm270, %v639
    %656 = vst.msk [vmem:[#allocation3 + $0x220] sm:$0xff] %vm270, %v640
    %657 = vst.msk [vmem:[#allocation3 + $0x268] sm:$0xff] %vm270, %v641
    %658 = vst.msk [vmem:[#allocation3 + $0x2b0] sm:$0xff] %vm270, %v642
    %659 = vst.msk [vmem:[#allocation3 + $0x2f8] sm:$0xff] %vm270, %v643
    %660 = vst.msk [vmem:[#allocation3 + $0x340] sm:$0xff] %vm270, %v644
    %661 = vst.msk [vmem:[#allocation3 + $0x388] sm:$0xff] %vm270, %v645
    %662 = vst.msk [vmem:[#allocation3 + $0x3d0] sm:$0xff] %vm270, %v646
    %663 = vst.msk [vmem:[#allocation3 + $0x418] sm:$0xff] %vm270, %v647
    %664 = vst.msk [vmem:[#allocation3 + $0x460] sm:$0xff] %vm270, %v648
    %s665 = scalar_lea.vmem [#allocation2], 32
    %v666 = vld [vmem:[%s665] sm:$0xff]
    %v667 = vld [vmem:[%s665 + $0x10] sm:$0xff]
    %v668 = vld [vmem:[%s665 + $0x20] sm:$0xff]
    %v669 = vld [vmem:[%s665 + $0x30] sm:$0xff]
    %v670 = vld [vmem:[%s665 + $0x40] sm:$0xff]
    %v671 = vld [vmem:[%s665 + $0x50] sm:$0xff]
    %v672 = vld [vmem:[%s665 + $0x60] sm:$0xff]
    %v673 = vld [vmem:[%s665 + $0x70] sm:$0xff]
    %v674 = vld [vmem:[%s665 + $0xa0] sm:$0xff]
    %v675 = vld [vmem:[%s665 + $0xb0] sm:$0xff]
    %v676 = vld [vmem:[%s665 + $0xc0] sm:$0xff]
    %v677 = vld [vmem:[%s665 + $0xd0] sm:$0xff]
    %v678 = vld [vmem:[%s665 + $0xe0] sm:$0xff]
    %v679 = vld [vmem:[%s665 + $0xf0] sm:$0xff]
    %v680 = vld [vmem:[%s665 + $0x100] sm:$0xff]
    %v681 = vld [vmem:[%s665 + $0x110] sm:$0xff]
    %682 = vst.msk [vmem:[#allocation3 + $0x30] sm:$0xff] %vm270, %v666
    %683 = vst.msk [vmem:[#allocation3 + $0x78] sm:$0xff] %vm270, %v667
    %684 = vst.msk [vmem:[#allocation3 + $0xc0] sm:$0xff] %vm270, %v668
    %685 = vst.msk [vmem:[#allocation3 + $0x108] sm:$0xff] %vm270, %v669
    %686 = vst.msk [vmem:[#allocation3 + $0x150] sm:$0xff] %vm270, %v670
    %687 = vst.msk [vmem:[#allocation3 + $0x198] sm:$0xff] %vm270, %v671
    %688 = vst.msk [vmem:[#allocation3 + $0x1e0] sm:$0xff] %vm270, %v672
    %689 = vst.msk [vmem:[#allocation3 + $0x228] sm:$0xff] %vm270, %v673
    %690 = vst.msk [vmem:[#allocation3 + $0x270] sm:$0xff] %vm270, %v674
    %691 = vst.msk [vmem:[#allocation3 + $0x2b8] sm:$0xff] %vm270, %v675
    %692 = vst.msk [vmem:[#allocation3 + $0x300] sm:$0xff] %vm270, %v676
    %693 = vst.msk [vmem:[#allocation3 + $0x348] sm:$0xff] %vm270, %v677
    %694 = vst.msk [vmem:[#allocation3 + $0x390] sm:$0xff] %vm270, %v678
    %695 = vst.msk [vmem:[#allocation3 + $0x3d8] sm:$0xff] %vm270, %v679
    %696 = vst.msk [vmem:[#allocation3 + $0x420] sm:$0xff] %vm270, %v680
    %697 = vst.msk [vmem:[#allocation3 + $0x468] sm:$0xff] %vm270, %v681
    %v698 = vld [vmem:[%s665 + $0x1] sm:$0xff]
    %v699 = vld [vmem:[%s665 + $0x11] sm:$0xff]
    %v700 = vld [vmem:[%s665 + $0x21] sm:$0xff]
    %v701 = vld [vmem:[%s665 + $0x31] sm:$0xff]
    %v702 = vld [vmem:[%s665 + $0x41] sm:$0xff]
    %v703 = vld [vmem:[%s665 + $0x51] sm:$0xff]
    %v704 = vld [vmem:[%s665 + $0x61] sm:$0xff]
    %v705 = vld [vmem:[%s665 + $0x71] sm:$0xff]
    %v706 = vld [vmem:[%s665 + $0xa1] sm:$0xff]
    %v707 = vld [vmem:[%s665 + $0xb1] sm:$0xff]
    %v708 = vld [vmem:[%s665 + $0xc1] sm:$0xff]
    %v709 = vld [vmem:[%s665 + $0xd1] sm:$0xff]
    %v710 = vld [vmem:[%s665 + $0xe1] sm:$0xff]
    %v711 = vld [vmem:[%s665 + $0xf1] sm:$0xff]
    %v712 = vld [vmem:[%s665 + $0x101] sm:$0xff]
    %v713 = vld [vmem:[%s665 + $0x111] sm:$0xff]
    %714 = vst.msk [vmem:[#allocation3 + $0x38] sm:$0xff] %vm270, %v698
    %715 = vst.msk [vmem:[#allocation3 + $0x80] sm:$0xff] %vm270, %v699
    %716 = vst.msk [vmem:[#allocation3 + $0xc8] sm:$0xff] %vm270, %v700
    %717 = vst.msk [vmem:[#allocation3 + $0x110] sm:$0xff] %vm270, %v701
    %718 = vst.msk [vmem:[#allocation3 + $0x158] sm:$0xff] %vm270, %v702
    %719 = vst.msk [vmem:[#allocation3 + $0x1a0] sm:$0xff] %vm270, %v703
    %720 = vst.msk [vmem:[#allocation3 + $0x1e8] sm:$0xff] %vm270, %v704
    %721 = vst.msk [vmem:[#allocation3 + $0x230] sm:$0xff] %vm270, %v705
    %722 = vst.msk [vmem:[#allocation3 + $0x278] sm:$0xff] %vm270, %v706
    %723 = vst.msk [vmem:[#allocation3 + $0x2c0] sm:$0xff] %vm270, %v707
    %724 = vst.msk [vmem:[#allocation3 + $0x308] sm:$0xff] %vm270, %v708
    %725 = vst.msk [vmem:[#allocation3 + $0x350] sm:$0xff] %vm270, %v709
    %726 = vst.msk [vmem:[#allocation3 + $0x398] sm:$0xff] %vm270, %v710
    %727 = vst.msk [vmem:[#allocation3 + $0x3e0] sm:$0xff] %vm270, %v711
    %728 = vst.msk [vmem:[#allocation3 + $0x428] sm:$0xff] %vm270, %v712
    %729 = vst.msk [vmem:[#allocation3 + $0x470] sm:$0xff] %vm270, %v713
    %v730 = vld [vmem:[%s665 + $0x2] sm:$0xff]
    %v731 = vld [vmem:[%s665 + $0x12] sm:$0xff]
    %v732 = vld [vmem:[%s665 + $0x22] sm:$0xff]
    %v733 = vld [vmem:[%s665 + $0x32] sm:$0xff]
    %v734 = vld [vmem:[%s665 + $0x42] sm:$0xff]
    %v735 = vld [vmem:[%s665 + $0x52] sm:$0xff]
    %v736 = vld [vmem:[%s665 + $0x62] sm:$0xff]
    %v737 = vld [vmem:[%s665 + $0x72] sm:$0xff]
    %v738 = vld [vmem:[%s665 + $0xa2] sm:$0xff]
    %v739 = vld [vmem:[%s665 + $0xb2] sm:$0xff]
    %v740 = vld [vmem:[%s665 + $0xc2] sm:$0xff]
    %v741 = vld [vmem:[%s665 + $0xd2] sm:$0xff]
    %v742 = vld [vmem:[%s665 + $0xe2] sm:$0xff]
    %v743 = vld [vmem:[%s665 + $0xf2] sm:$0xff]
    %v744 = vld [vmem:[%s665 + $0x102] sm:$0xff]
    %v745 = vld [vmem:[%s665 + $0x112] sm:$0xff]
    %746 = vst.msk [vmem:[#allocation3 + $0x40] sm:$0xff] %vm270, %v730
    %747 = vst.msk [vmem:[#allocation3 + $0x88] sm:$0xff] %vm270, %v731
    %748 = vst.msk [vmem:[#allocation3 + $0xd0] sm:$0xff] %vm270, %v732
    %749 = vst.msk [vmem:[#allocation3 + $0x118] sm:$0xff] %vm270, %v733
    %750 = vst.msk [vmem:[#allocation3 + $0x160] sm:$0xff] %vm270, %v734
    %751 = vst.msk [vmem:[#allocation3 + $0x1a8] sm:$0xff] %vm270, %v735
    %752 = vst.msk [vmem:[#allocation3 + $0x1f0] sm:$0xff] %vm270, %v736
    %753 = vst.msk [vmem:[#allocation3 + $0x238] sm:$0xff] %vm270, %v737
    %754 = vst.msk [vmem:[#allocation3 + $0x280] sm:$0xff] %vm270, %v738
    %755 = vst.msk [vmem:[#allocation3 + $0x2c8] sm:$0xff] %vm270, %v739
    %756 = vst.msk [vmem:[#allocation3 + $0x310] sm:$0xff] %vm270, %v740
    %757 = vst.msk [vmem:[#allocation3 + $0x358] sm:$0xff] %vm270, %v741
    %758 = vst.msk [vmem:[#allocation3 + $0x3a0] sm:$0xff] %vm270, %v742
    %759 = vst.msk [vmem:[#allocation3 + $0x3e8] sm:$0xff] %vm270, %v743
    %760 = vst.msk [vmem:[#allocation3 + $0x430] sm:$0xff] %vm270, %v744
    %761 = vst.msk [vmem:[#allocation3 + $0x478] sm:$0xff] %vm270, %v745
    %v762 = vld [vmem:[#allocation3] sm:$0xff]
    %v763 = vld [vmem:[#allocation3 + $0x8] sm:$0xff]
    %v764 = vld [vmem:[#allocation3 + $0x10] sm:$0xff]
    %v765 = vld [vmem:[#allocation3 + $0x18] sm:$0xff]
    %v766 = vld [vmem:[#allocation3 + $0x20] sm:$0xff]
    %v767 = vld [vmem:[#allocation3 + $0x28] sm:$0xff]
    %v768 = vld [vmem:[#allocation3 + $0x30] sm:$0xff]
    %v769 = vld [vmem:[#allocation3 + $0x38] sm:$0xff]
    %v770 = vld [vmem:[#allocation3 + $0x40] sm:$0xff]
    %v771 = vld [vmem:[#allocation3 + $0x48] sm:$0xff]
    %v772 = vld [vmem:[#allocation3 + $0x50] sm:$0xff]
    %v773 = vld [vmem:[#allocation3 + $0x58] sm:$0xff]
    %v774 = vld [vmem:[#allocation3 + $0x60] sm:$0xff]
    %v775 = vld [vmem:[#allocation3 + $0x68] sm:$0xff]
    %v776 = vld [vmem:[#allocation3 + $0x70] sm:$0xff]
    %v777 = vld [vmem:[#allocation3 + $0x78] sm:$0xff]
    %v778 = vld [vmem:[#allocation3 + $0x80] sm:$0xff]
    %v779 = vld [vmem:[#allocation3 + $0x88] sm:$0xff]
    %v780 = vld [vmem:[#allocation3 + $0x90] sm:$0xff]
    %v781 = vld [vmem:[#allocation3 + $0x98] sm:$0xff]
    %v782 = vld [vmem:[#allocation3 + $0xa0] sm:$0xff]
    %v783 = vld [vmem:[#allocation3 + $0xa8] sm:$0xff]
    %v784 = vld [vmem:[#allocation3 + $0xb0] sm:$0xff]
    %v785 = vld [vmem:[#allocation3 + $0xb8] sm:$0xff]
    %v786 = vld [vmem:[#allocation3 + $0xc0] sm:$0xff]
    %v787 = vld [vmem:[#allocation3 + $0xc8] sm:$0xff]
    %v788 = vld [vmem:[#allocation3 + $0xd0] sm:$0xff]
    %v789 = vld [vmem:[#allocation3 + $0xd8] sm:$0xff]
    %v790 = vld [vmem:[#allocation3 + $0xe0] sm:$0xff]
    %v791 = vld [vmem:[#allocation3 + $0xe8] sm:$0xff]
    %v792 = vld [vmem:[#allocation3 + $0xf0] sm:$0xff]
    %v793 = vld [vmem:[#allocation3 + $0xf8] sm:$0xff]
    %v794 = vld [vmem:[#allocation3 + $0x100] sm:$0xff]
    %v795 = vld [vmem:[#allocation3 + $0x108] sm:$0xff]
    %v796 = vld [vmem:[#allocation3 + $0x110] sm:$0xff]
    %v797 = vld [vmem:[#allocation3 + $0x118] sm:$0xff]
    %v798 = vld [vmem:[#allocation3 + $0x120] sm:$0xff]
    %v799 = vld [vmem:[#allocation3 + $0x128] sm:$0xff]
    %v800 = vld [vmem:[#allocation3 + $0x130] sm:$0xff]
    %v801 = vld [vmem:[#allocation3 + $0x138] sm:$0xff]
    %v802 = vld [vmem:[#allocation3 + $0x140] sm:$0xff]
    %v803 = vld [vmem:[#allocation3 + $0x148] sm:$0xff]
    %v804 = vld [vmem:[#allocation3 + $0x150] sm:$0xff]
    %v805 = vld [vmem:[#allocation3 + $0x158] sm:$0xff]
    %v806 = vld [vmem:[#allocation3 + $0x160] sm:$0xff]
    %v807 = vld [vmem:[#allocation3 + $0x168] sm:$0xff]
    %v808 = vld [vmem:[#allocation3 + $0x170] sm:$0xff]
    %v809 = vld [vmem:[#allocation3 + $0x178] sm:$0xff]
    %v810 = vld [vmem:[#allocation3 + $0x180] sm:$0xff]
    %v811 = vld [vmem:[#allocation3 + $0x188] sm:$0xff]
    %v812 = vld [vmem:[#allocation3 + $0x190] sm:$0xff]
    %v813 = vld [vmem:[#allocation3 + $0x198] sm:$0xff]
    %v814 = vld [vmem:[#allocation3 + $0x1a0] sm:$0xff]
    %v815 = vld [vmem:[#allocation3 + $0x1a8] sm:$0xff]
    %v816 = vld [vmem:[#allocation3 + $0x1b0] sm:$0xff]
    %v817 = vld [vmem:[#allocation3 + $0x1b8] sm:$0xff]
    %v818 = vld [vmem:[#allocation3 + $0x1c0] sm:$0xff]
    %v819 = vld [vmem:[#allocation3 + $0x1c8] sm:$0xff]
    %v820 = vld [vmem:[#allocation3 + $0x1d0] sm:$0xff]
    %v821 = vld [vmem:[#allocation3 + $0x1d8] sm:$0xff]
    %v822 = vld [vmem:[#allocation3 + $0x1e0] sm:$0xff]
    %v823 = vld [vmem:[#allocation3 + $0x1e8] sm:$0xff]
    %v824 = vld [vmem:[#allocation3 + $0x1f0] sm:$0xff]
    %v825 = vld [vmem:[#allocation3 + $0x1f8] sm:$0xff]
    %v826 = vld [vmem:[#allocation3 + $0x200] sm:$0xff]
    %v827 = vld [vmem:[#allocation3 + $0x208] sm:$0xff]
    %v828 = vld [vmem:[#allocation3 + $0x210] sm:$0xff]
    %v829 = vld [vmem:[#allocation3 + $0x218] sm:$0xff]
    %v830 = vld [vmem:[#allocation3 + $0x220] sm:$0xff]
    %v831 = vld [vmem:[#allocation3 + $0x228] sm:$0xff]
    %v832 = vld [vmem:[#allocation3 + $0x230] sm:$0xff]
    %v833 = vld [vmem:[#allocation3 + $0x238] sm:$0xff]
    %v834 = vld [vmem:[#allocation3 + $0x240] sm:$0xff]
    %v835 = vld [vmem:[#allocation3 + $0x248] sm:$0xff]
    %v836 = vld [vmem:[#allocation3 + $0x250] sm:$0xff]
    %v837 = vld [vmem:[#allocation3 + $0x258] sm:$0xff]
    %v838 = vld [vmem:[#allocation3 + $0x260] sm:$0xff]
    %v839 = vld [vmem:[#allocation3 + $0x268] sm:$0xff]
    %v840 = vld [vmem:[#allocation3 + $0x270] sm:$0xff]
    %v841 = vld [vmem:[#allocation3 + $0x278] sm:$0xff]
    %v842 = vld [vmem:[#allocation3 + $0x280] sm:$0xff]
    %v843 = vld [vmem:[#allocation3 + $0x288] sm:$0xff]
    %v844 = vld [vmem:[#allocation3 + $0x290] sm:$0xff]
    %v845 = vld [vmem:[#allocation3 + $0x298] sm:$0xff]
    %v846 = vld [vmem:[#allocation3 + $0x2a0] sm:$0xff]
    %v847 = vld [vmem:[#allocation3 + $0x2a8] sm:$0xff]
    %v848 = vld [vmem:[#allocation3 + $0x2b0] sm:$0xff]
    %v849 = vld [vmem:[#allocation3 + $0x2b8] sm:$0xff]
    %v850 = vld [vmem:[#allocation3 + $0x2c0] sm:$0xff]
    %v851 = vld [vmem:[#allocation3 + $0x2c8] sm:$0xff]
    %v852 = vld [vmem:[#allocation3 + $0x2d0] sm:$0xff]
    %v853 = vld [vmem:[#allocation3 + $0x2d8] sm:$0xff]
    %v854 = vld [vmem:[#allocation3 + $0x2e0] sm:$0xff]
    %v855 = vld [vmem:[#allocation3 + $0x2e8] sm:$0xff]
    %v856 = vld [vmem:[#allocation3 + $0x2f0] sm:$0xff]
    %v857 = vld [vmem:[#allocation3 + $0x2f8] sm:$0xff]
    %v858 = vld [vmem:[#allocation3 + $0x300] sm:$0xff]
    %v859 = vld [vmem:[#allocation3 + $0x308] sm:$0xff]
    %v860 = vld [vmem:[#allocation3 + $0x310] sm:$0xff]
    %v861 = vld [vmem:[#allocation3 + $0x318] sm:$0xff]
    %v862 = vld [vmem:[#allocation3 + $0x320] sm:$0xff]
    %v863 = vld [vmem:[#allocation3 + $0x328] sm:$0xff]
    %v864 = vld [vmem:[#allocation3 + $0x330] sm:$0xff]
    %v865 = vld [vmem:[#allocation3 + $0x338] sm:$0xff]
    %v866 = vld [vmem:[#allocation3 + $0x340] sm:$0xff]
    %v867 = vld [vmem:[#allocation3 + $0x348] sm:$0xff]
    %v868 = vld [vmem:[#allocation3 + $0x350] sm:$0xff]
    %v869 = vld [vmem:[#allocation3 + $0x358] sm:$0xff]
    %v870 = vld [vmem:[#allocation3 + $0x360] sm:$0xff]
    %v871 = vld [vmem:[#allocation3 + $0x368] sm:$0xff]
    %v872 = vld [vmem:[#allocation3 + $0x370] sm:$0xff]
    %v873 = vld [vmem:[#allocation3 + $0x378] sm:$0xff]
    %v874 = vld [vmem:[#allocation3 + $0x380] sm:$0xff]
    %v875 = vld [vmem:[#allocation3 + $0x388] sm:$0xff]
    %v876 = vld [vmem:[#allocation3 + $0x390] sm:$0xff]
    %v877 = vld [vmem:[#allocation3 + $0x398] sm:$0xff]
    %v878 = vld [vmem:[#allocation3 + $0x3a0] sm:$0xff]
    %v879 = vld [vmem:[#allocation3 + $0x3a8] sm:$0xff]
    %v880 = vld [vmem:[#allocation3 + $0x3b0] sm:$0xff]
    %v881 = vld [vmem:[#allocation3 + $0x3b8] sm:$0xff]
    %v882 = vld [vmem:[#allocation3 + $0x3c0] sm:$0xff]
    %v883 = vld [vmem:[#allocation3 + $0x3c8] sm:$0xff]
    %v884 = vld [vmem:[#allocation3 + $0x3d0] sm:$0xff]
    %v885 = vld [vmem:[#allocation3 + $0x3d8] sm:$0xff]
    %v886 = vld [vmem:[#allocation3 + $0x3e0] sm:$0xff]
    %v887 = vld [vmem:[#allocation3 + $0x3e8] sm:$0xff]
    %v888 = vld [vmem:[#allocation3 + $0x3f0] sm:$0xff]
    %v889 = vld [vmem:[#allocation3 + $0x3f8] sm:$0xff]
    %v890 = vld [vmem:[#allocation3 + $0x400] sm:$0xff]
    %v891 = vld [vmem:[#allocation3 + $0x408] sm:$0xff]
    %v892 = vld [vmem:[#allocation3 + $0x410] sm:$0xff]
    %v893 = vld [vmem:[#allocation3 + $0x418] sm:$0xff]
    %v894 = vld [vmem:[#allocation3 + $0x420] sm:$0xff]
    %v895 = vld [vmem:[#allocation3 + $0x428] sm:$0xff]
    %v896 = vld [vmem:[#allocation3 + $0x430] sm:$0xff]
    %v897 = vld [vmem:[#allocation3 + $0x438] sm:$0xff]
    %v898 = vld [vmem:[#allocation3 + $0x440] sm:$0xff]
    %v899 = vld [vmem:[#allocation3 + $0x448] sm:$0xff]
    %v900 = vld [vmem:[#allocation3 + $0x450] sm:$0xff]
    %v901 = vld [vmem:[#allocation3 + $0x458] sm:$0xff]
    %v902 = vld [vmem:[#allocation3 + $0x460] sm:$0xff]
    %v903 = vld [vmem:[#allocation3 + $0x468] sm:$0xff]
    %v904 = vld [vmem:[#allocation3 + $0x470] sm:$0xff]
    %v905 = vld [vmem:[#allocation3 + $0x478] sm:$0xff]
    %v906 = vld [vmem:[%s3] sm:$0xff]
    %v907 = vld [vmem:[%s3 + $0x8] sm:$0xff]
    %v908 = vld [vmem:[%s3 + $0x10] sm:$0xff]
    %v909 = vld [vmem:[%s3 + $0x18] sm:$0xff]
    %v910 = vld [vmem:[%s3 + $0x20] sm:$0xff]
    %v911 = vld [vmem:[%s3 + $0x28] sm:$0xff]
    %v912 = vld [vmem:[%s3 + $0x30] sm:$0xff]
    %v913 = vld [vmem:[%s3 + $0x38] sm:$0xff]
    %v914 = vld [vmem:[%s3 + $0x40] sm:$0xff]
    %v915 = vld [vmem:[%s3 + $0x48] sm:$0xff]
    %v916 = vld [vmem:[%s3 + $0x50] sm:$0xff]
    %v917 = vld [vmem:[%s3 + $0x58] sm:$0xff]
    %v918 = vld [vmem:[%s3 + $0x60] sm:$0xff]
    %v919 = vld [vmem:[%s3 + $0x68] sm:$0xff]
    %v920 = vld [vmem:[%s3 + $0x70] sm:$0xff]
    %v921 = vld [vmem:[%s3 + $0x78] sm:$0xff]
    %v922 = vld [vmem:[%s3 + $0x80] sm:$0xff]
    %v923 = vld [vmem:[%s3 + $0x88] sm:$0xff]
    %v924 = vld [vmem:[%s3 + $0x90] sm:$0xff]
    %v925 = vld [vmem:[%s3 + $0x98] sm:$0xff]
    %v926 = vld [vmem:[%s3 + $0xa0] sm:$0xff]
    %v927 = vld [vmem:[%s3 + $0xa8] sm:$0xff]
    %v928 = vld [vmem:[%s3 + $0xb0] sm:$0xff]
    %v929 = vld [vmem:[%s3 + $0xb8] sm:$0xff]
    %v930 = vld [vmem:[%s3 + $0xc0] sm:$0xff]
    %v931 = vld [vmem:[%s3 + $0xc8] sm:$0xff]
    %v932 = vld [vmem:[%s3 + $0xd0] sm:$0xff]
    %v933 = vld [vmem:[%s3 + $0xd8] sm:$0xff]
    %v934 = vld [vmem:[%s3 + $0xe0] sm:$0xff]
    %v935 = vld [vmem:[%s3 + $0xe8] sm:$0xff]
    %v936 = vld [vmem:[%s3 + $0xf0] sm:$0xff]
    %v937 = vld [vmem:[%s3 + $0xf8] sm:$0xff]
    %v938 = vld [vmem:[%s3 + $0x100] sm:$0xff]
    %v939 = vld [vmem:[%s3 + $0x108] sm:$0xff]
    %v940 = vld [vmem:[%s3 + $0x110] sm:$0xff]
    %v941 = vld [vmem:[%s3 + $0x118] sm:$0xff]
    %v942 = vld [vmem:[%s3 + $0x120] sm:$0xff]
    %v943 = vld [vmem:[%s3 + $0x128] sm:$0xff]
    %v944 = vld [vmem:[%s3 + $0x130] sm:$0xff]
    %v945 = vld [vmem:[%s3 + $0x138] sm:$0xff]
    %v946 = vld [vmem:[%s3 + $0x140] sm:$0xff]
    %v947 = vld [vmem:[%s3 + $0x148] sm:$0xff]
    %v948 = vld [vmem:[%s3 + $0x150] sm:$0xff]
    %v949 = vld [vmem:[%s3 + $0x158] sm:$0xff]
    %v950 = vld [vmem:[%s3 + $0x160] sm:$0xff]
    %v951 = vld [vmem:[%s3 + $0x168] sm:$0xff]
    %v952 = vld [vmem:[%s3 + $0x170] sm:$0xff]
    %v953 = vld [vmem:[%s3 + $0x178] sm:$0xff]
    %v954 = vld [vmem:[%s3 + $0x180] sm:$0xff]
    %v955 = vld [vmem:[%s3 + $0x188] sm:$0xff]
    %v956 = vld [vmem:[%s3 + $0x190] sm:$0xff]
    %v957 = vld [vmem:[%s3 + $0x198] sm:$0xff]
    %v958 = vld [vmem:[%s3 + $0x1a0] sm:$0xff]
    %v959 = vld [vmem:[%s3 + $0x1a8] sm:$0xff]
    %v960 = vld [vmem:[%s3 + $0x1b0] sm:$0xff]
    %v961 = vld [vmem:[%s3 + $0x1b8] sm:$0xff]
    %v962 = vld [vmem:[%s3 + $0x1c0] sm:$0xff]
    %v963 = vld [vmem:[%s3 + $0x1c8] sm:$0xff]
    %v964 = vld [vmem:[%s3 + $0x1d0] sm:$0xff]
    %v965 = vld [vmem:[%s3 + $0x1d8] sm:$0xff]
    %v966 = vld [vmem:[%s3 + $0x1e0] sm:$0xff]
    %v967 = vld [vmem:[%s3 + $0x1e8] sm:$0xff]
    %v968 = vld [vmem:[%s3 + $0x1f0] sm:$0xff]
    %v969 = vld [vmem:[%s3 + $0x1f8] sm:$0xff]
    %v970 = vld [vmem:[%s3 + $0x200] sm:$0xff]
    %v971 = vld [vmem:[%s3 + $0x208] sm:$0xff]
    %v972 = vld [vmem:[%s3 + $0x210] sm:$0xff]
    %v973 = vld [vmem:[%s3 + $0x218] sm:$0xff]
    %v974 = vld [vmem:[%s3 + $0x220] sm:$0xff]
    %v975 = vld [vmem:[%s3 + $0x228] sm:$0xff]
    %v976 = vld [vmem:[%s3 + $0x230] sm:$0xff]
    %v977 = vld [vmem:[%s3 + $0x238] sm:$0xff]
    %v978 = vld [vmem:[%s3 + $0x240] sm:$0xff]
    %v979 = vld [vmem:[%s3 + $0x248] sm:$0xff]
    %v980 = vld [vmem:[%s3 + $0x250] sm:$0xff]
    %v981 = vld [vmem:[%s3 + $0x258] sm:$0xff]
    %v982 = vld [vmem:[%s3 + $0x260] sm:$0xff]
    %v983 = vld [vmem:[%s3 + $0x268] sm:$0xff]
    %v984 = vld [vmem:[%s3 + $0x270] sm:$0xff]
    %v985 = vld [vmem:[%s3 + $0x278] sm:$0xff]
    %v986 = vld [vmem:[%s3 + $0x280] sm:$0xff]
    %v987 = vld [vmem:[%s3 + $0x288] sm:$0xff]
    %v988 = vld [vmem:[%s3 + $0x290] sm:$0xff]
    %v989 = vld [vmem:[%s3 + $0x298] sm:$0xff]
    %v990 = vld [vmem:[%s3 + $0x2a0] sm:$0xff]
    %v991 = vld [vmem:[%s3 + $0x2a8] sm:$0xff]
    %v992 = vld [vmem:[%s3 + $0x2b0] sm:$0xff]
    %v993 = vld [vmem:[%s3 + $0x2b8] sm:$0xff]
    %v994 = vld [vmem:[%s3 + $0x2c0] sm:$0xff]
    %v995 = vld [vmem:[%s3 + $0x2c8] sm:$0xff]
    %v996 = vld [vmem:[%s3 + $0x2d0] sm:$0xff]
    %v997 = vld [vmem:[%s3 + $0x2d8] sm:$0xff]
    %v998 = vld [vmem:[%s3 + $0x2e0] sm:$0xff]
    %v999 = vld [vmem:[%s3 + $0x2e8] sm:$0xff]
    %v1000 = vld [vmem:[%s3 + $0x2f0] sm:$0xff]
    %v1001 = vld [vmem:[%s3 + $0x2f8] sm:$0xff]
    %v1002 = vld [vmem:[%s3 + $0x300] sm:$0xff]
    %v1003 = vld [vmem:[%s3 + $0x308] sm:$0xff]
    %v1004 = vld [vmem:[%s3 + $0x310] sm:$0xff]
    %v1005 = vld [vmem:[%s3 + $0x318] sm:$0xff]
    %v1006 = vld [vmem:[%s3 + $0x320] sm:$0xff]
    %v1007 = vld [vmem:[%s3 + $0x328] sm:$0xff]
    %v1008 = vld [vmem:[%s3 + $0x330] sm:$0xff]
    %v1009 = vld [vmem:[%s3 + $0x338] sm:$0xff]
    %v1010 = vld [vmem:[%s3 + $0x340] sm:$0xff]
    %v1011 = vld [vmem:[%s3 + $0x348] sm:$0xff]
    %v1012 = vld [vmem:[%s3 + $0x350] sm:$0xff]
    %v1013 = vld [vmem:[%s3 + $0x358] sm:$0xff]
    %v1014 = vld [vmem:[%s3 + $0x360] sm:$0xff]
    %v1015 = vld [vmem:[%s3 + $0x368] sm:$0xff]
    %v1016 = vld [vmem:[%s3 + $0x370] sm:$0xff]
    %v1017 = vld [vmem:[%s3 + $0x378] sm:$0xff]
    %v1018 = vld [vmem:[%s3 + $0x380] sm:$0xff]
    %v1019 = vld [vmem:[%s3 + $0x388] sm:$0xff]
    %v1020 = vld [vmem:[%s3 + $0x390] sm:$0xff]
    %v1021 = vld [vmem:[%s3 + $0x398] sm:$0xff]
    %v1022 = vld [vmem:[%s3 + $0x3a0] sm:$0xff]
    %v1023 = vld [vmem:[%s3 + $0x3a8] sm:$0xff]
    %v1024 = vld [vmem:[%s3 + $0x3b0] sm:$0xff]
    %v1025 = vld [vmem:[%s3 + $0x3b8] sm:$0xff]
    %v1026 = vld [vmem:[%s3 + $0x3c0] sm:$0xff]
    %v1027 = vld [vmem:[%s3 + $0x3c8] sm:$0xff]
    %v1028 = vld [vmem:[%s3 + $0x3d0] sm:$0xff]
    %v1029 = vld [vmem:[%s3 + $0x3d8] sm:$0xff]
    %v1030 = vld [vmem:[%s3 + $0x3e0] sm:$0xff]
    %v1031 = vld [vmem:[%s3 + $0x3e8] sm:$0xff]
    %v1032 = vld [vmem:[%s3 + $0x3f0] sm:$0xff]
    %v1033 = vld [vmem:[%s3 + $0x3f8] sm:$0xff]
    %v1034 = vld [vmem:[%s3 + $0x400] sm:$0xff]
    %v1035 = vld [vmem:[%s3 + $0x408] sm:$0xff]
    %v1036 = vld [vmem:[%s3 + $0x410] sm:$0xff]
    %v1037 = vld [vmem:[%s3 + $0x418] sm:$0xff]
    %v1038 = vld [vmem:[%s3 + $0x420] sm:$0xff]
    %v1039 = vld [vmem:[%s3 + $0x428] sm:$0xff]
    %v1040 = vld [vmem:[%s3 + $0x430] sm:$0xff]
    %v1041 = vld [vmem:[%s3 + $0x438] sm:$0xff]
    %v1042 = vld [vmem:[%s3 + $0x440] sm:$0xff]
    %v1043 = vld [vmem:[%s3 + $0x448] sm:$0xff]
    %v1044 = vld [vmem:[%s3 + $0x450] sm:$0xff]
    %v1045 = vld [vmem:[%s3 + $0x458] sm:$0xff]
    %v1046 = vld [vmem:[%s3 + $0x460] sm:$0xff]
    %v1047 = vld [vmem:[%s3 + $0x468] sm:$0xff]
    %v1048 = vld [vmem:[%s3 + $0x470] sm:$0xff]
    %v1049 = vld [vmem:[%s3 + $0x478] sm:$0xff]
    %v1050 = vld [vmem:[%s4] sm:$0x1]
    %v1052 = vlaneseq
    %v1053 = vshrl.u32 %v1052, 7
    %v1054 = vsub.s32 0, %v1053
    %v1055 = vrot.slane %v1050, %v1054
    %1057 = vmatprep.subr.mxu0 0.0
    %1058 = vmatpush1.msra.mxu0 %v906
    %1059 = vmatprep.subr.mxu0 0.0
    %1060 = vmatpush1.msra.mxu0 %v907
    %1061 = vmatprep.subr.mxu0 0.0
    %1062 = vmatpush1.msra.mxu0 %v908
    %1063 = vmatprep.subr.mxu0 0.0
    %1064 = vmatpush1.msra.mxu0 %v909
    %1065 = vmatprep.subr.mxu0 0.0
    %1066 = vmatpush1.msra.mxu0 %v910
    %1067 = vmatprep.subr.mxu0 0.0
    %1068 = vmatpush1.msra.mxu0 %v911
    %1069 = vmatprep.subr.mxu0 0.0
    %1070 = vmatpush1.msra.mxu0 %v912
    %1071 = vmatprep.subr.mxu0 0.0
    %1072 = vmatpush1.msra.mxu0 %v913
    %1073 = vmatprep.subr.mxu0 0.0
    %1074 = vmatpush1.msra.mxu0 %v914
    %1075 = vmatprep.subr.mxu0 0.0
    %1076 = vmatpush1.msra.mxu0 %v915
    %1077 = vmatprep.subr.mxu0 0.0
    %1078 = vmatpush1.msra.mxu0 %v916
    %1079 = vmatprep.subr.mxu0 0.0
    %1080 = vmatpush1.msra.mxu0 %v917
    %1081 = vmatprep.subr.mxu0 0.0
    %1082 = vmatpush1.msra.mxu0 %v918
    %1083 = vmatprep.subr.mxu0 0.0
    %1084 = vmatpush1.msra.mxu0 %v919
    %1085 = vmatprep.subr.mxu0 0.0
    %1086 = vmatpush1.msra.mxu0 %v920
    %1087 = vmatprep.subr.mxu0 0.0
    %1088 = vmatpush1.msra.mxu0 %v921
    %1089 = vmatprep.subr.mxu0 0.0
    %1090 = vmatpush1.msra.mxu0 %v922
    %1091 = vmatprep.subr.mxu0 0.0
    %1092 = vmatpush1.msra.mxu0 %v923
    %1093 = vmatprep.subr.mxu0 0.0
    %1094 = vmatpush1.msra.mxu0 %v924
    %1095 = vmatprep.subr.mxu0 0.0
    %1096 = vmatpush1.msra.mxu0 %v925
    %1097 = vmatprep.subr.mxu0 0.0
    %1098 = vmatpush1.msra.mxu0 %v926
    %1099 = vmatprep.subr.mxu0 0.0
    %1100 = vmatpush1.msra.mxu0 %v927
    %1101 = vmatprep.subr.mxu0 0.0
    %1102 = vmatpush1.msra.mxu0 %v928
    %1103 = vmatprep.subr.mxu0 0.0
    %1104 = vmatpush1.msra.mxu0 %v929
    %1105 = vmatprep.subr.mxu0 0.0
    %1106 = vmatpush1.msra.mxu0 %v930
    %1107 = vmatprep.subr.mxu0 0.0
    %1108 = vmatpush1.msra.mxu0 %v931
    %1109 = vmatprep.subr.mxu0 0.0
    %1110 = vmatpush1.msra.mxu0 %v932
    %1111 = vmatprep.subr.mxu0 0.0
    %1112 = vmatpush1.msra.mxu0 %v933
    %1113 = vmatprep.subr.mxu0 0.0
    %1114 = vmatpush1.msra.mxu0 %v934
    %1115 = vmatprep.subr.mxu0 0.0
    %1116 = vmatpush1.msra.mxu0 %v935
    %1117 = vmatprep.subr.mxu0 0.0
    %1118 = vmatpush1.msra.mxu0 %v936
    %1119 = vmatprep.subr.mxu0 0.0
    %1120 = vmatpush1.msra.mxu0 %v937
    %1121 = vmatprep.mubr.f32.mxu0 %v763
    %1122 = vmatmul.mubr.f32.gmra.mrb[0].mxu0 %v762
    %v1123 = vpop.f32.mrb[0].mxu0
    %v1124 = vadd.f32 %v1055, %v1123
    %v1125 = vpop.f32.mrb[0].mxu0
    %1126 = vmatprep.mubr.f32.mxu0 %v772
    %1127 = vmatmul.mubr.f32.gmra.mrb[0].mxu0 %v771
    %v1128 = vpop.f32.mrb[0].mxu0
    %v1129 = vadd.f32 %v1055, %v1128
    %v1130 = vpop.f32.mrb[0].mxu0
    %1131 = vmatprep.mubr.f32.mxu0 %v781
    %1132 = vmatmul.mubr.f32.gmra.mrb[0].mxu0 %v780
    %v1133 = vpop.f32.mrb[0].mxu0
    %v1134 = vadd.f32 %v1055, %v1133
    %v1135 = vpop.f32.mrb[0].mxu0
    %1136 = vmatprep.mubr.f32.mxu0 %v790
    %1137 = vmatmul.mubr.f32.gmra.mrb[0].mxu0 %v789
    %v1138 = vpop.f32.mrb[0].mxu0
    %v1139 = vadd.f32 %v1055, %v1138
    %v1140 = vpop.f32.mrb[0].mxu0
    %1141 = vmatprep.mubr.f32.mxu0 %v799
    %1142 = vmatmul.mubr.f32.gmra.mrb[0].mxu0 %v798
    %v1143 = vpop.f32.mrb[0].mxu0
    %v1144 = vadd.f32 %v1055, %v1143
    %v1145 = vpop.f32.mrb[0].mxu0
    %1146 = vmatprep.mubr.f32.mxu0 %v808
    %1147 = vmatmul.mubr.f32.gmra.mrb[0].mxu0 %v807
    %v1148 = vpop.f32.mrb[0].mxu0
    %v1149 = vadd.f32 %v1055, %v1148
    %v1150 = vpop.f32.mrb[0].mxu0
    %1151 = vmatprep.mubr.f32.mxu0 %v817
    %1152 = vmatmul.mubr.f32.gmra.mrb[0].mxu0 %v816
    %v1153 = vpop.f32.mrb[0].mxu0
    %v1154 = vadd.f32 %v1055, %v1153
    %v1155 = vpop.f32.mrb[0].mxu0
    %1156 = vmatprep.mubr.f32.mxu0 %v826
    %1157 = vmatmul.mubr.f32.gmra.mrb[0].mxu0 %v825
    %v1158 = vpop.f32.mrb[0].mxu0
    %v1159 = vadd.f32 %v1055, %v1158
    %v1160 = vpop.f32.mrb[0].mxu0
    %1161 = vmatprep.mubr.f32.mxu0 %v835
    %1162 = vmatmul.mubr.f32.gmra.mrb[0].mxu0 %v834
    %v1163 = vpop.f32.mrb[0].mxu0
    %v1164 = vadd.f32 %v1055, %v1163
    %v1165 = vpop.f32.mrb[0].mxu0
    %1166 = vmatprep.mubr.f32.mxu0 %v844
    %1167 = vmatmul.mubr.f32.gmra.mrb[0].mxu0 %v843
    %v1168 = vpop.f32.mrb[0].mxu0
    %v1169 = vadd.f32 %v1055, %v1168
    %v1170 = vpop.f32.mrb[0].mxu0
    %1171 = vmatprep.mubr.f32.mxu0 %v853
    %1172 = vmatmul.mubr.f32.gmra.mrb[0].mxu0 %v852
    %v1173 = vpop.f32.mrb[0].mxu0
    %v1174 = vadd.f32 %v1055, %v1173
    %v1175 = vpop.f32.mrb[0].mxu0
    %1176 = vmatprep.mubr.f32.mxu0 %v862
    %1177 = vmatmul.mubr.f32.gmra.mrb[0].mxu0 %v861
    %v1178 = vpop.f32.mrb[0].mxu0
    %v1179 = vadd.f32 %v1055, %v1178
    %v1180 = vpop.f32.mrb[0].mxu0
    %1181 = vmatprep.mubr.f32.mxu0 %v871
    %1182 = vmatmul.mubr.f32.gmra.mrb[0].mxu0 %v870
    %v1183 = vpop.f32.mrb[0].mxu0
    %v1184 = vadd.f32 %v1055, %v1183
    %v1185 = vpop.f32.mrb[0].mxu0
    %1186 = vmatprep.mubr.f32.mxu0 %v880
    %1187 = vmatmul.mubr.f32.gmra.mrb[0].mxu0 %v879
    %v1188 = vpop.f32.mrb[0].mxu0
    %v1189 = vadd.f32 %v1055, %v1188
    %v1190 = vpop.f32.mrb[0].mxu0
    %1191 = vmatprep.mubr.f32.mxu0 %v889
    %1192 = vmatmul.mubr.f32.gmra.mrb[0].mxu0 %v888
    %v1193 = vpop.f32.mrb[0].mxu0
    %v1194 = vadd.f32 %v1055, %v1193
    %v1195 = vpop.f32.mrb[0].mxu0
    %1196 = vmatprep.mubr.f32.mxu0 %v898
    %1197 = vmatmul.mubr.f32.gmra.mrb[0].mxu0 %v897
    %v1198 = vpop.f32.mrb[0].mxu0
    %v1199 = vadd.f32 %v1055, %v1198
    %v1200 = vpop.f32.mrb[0].mxu0
    %1201 = vdwg.mxu0
    %1202 = vmatprep.subr.mxu0 0.0
    %1203 = vmatpush1.msra.mxu0 %v938
    %1204 = vmatprep.subr.mxu0 0.0
    %1205 = vmatpush1.msra.mxu0 %v939
    %1206 = vmatprep.subr.mxu0 0.0
    %1207 = vmatpush1.msra.mxu0 %v940
    %1208 = vmatprep.subr.mxu0 0.0
    %1209 = vmatpush1.msra.mxu0 %v941
    %1210 = vmatprep.subr.mxu0 0.0
    %1211 = vmatpush1.msra.mxu0 %v942
    %1212 = vmatprep.subr.mxu0 0.0
    %1213 = vmatpush1.msra.mxu0 %v943
    %1214 = vmatprep.subr.mxu0 0.0
    %1215 = vmatpush1.msra.mxu0 %v944
    %1216 = vmatprep.subr.mxu0 0.0
    %1217 = vmatpush1.msra.mxu0 %v945
    %1218 = vmatprep.subr.mxu0 0.0
    %1219 = vmatpush1.msra.mxu0 %v946
    %1220 = vmatprep.subr.mxu0 0.0
    %1221 = vmatpush1.msra.mxu0 %v947
    %1222 = vmatprep.subr.mxu0 0.0
    %1223 = vmatpush1.msra.mxu0 %v948
    %1224 = vmatprep.subr.mxu0 0.0
    %1225 = vmatpush1.msra.mxu0 %v949
    %1226 = vmatprep.subr.mxu0 0.0
    %1227 = vmatpush1.msra.mxu0 %v950
    %1228 = vmatprep.subr.mxu0 0.0
    %1229 = vmatpush1.msra.mxu0 %v951
    %1230 = vmatprep.subr.mxu0 0.0
    %1231 = vmatpush1.msra.mxu0 %v952
    %1232 = vmatprep.subr.mxu0 0.0
    %1233 = vmatpush1.msra.mxu0 %v953
    %1234 = vmatprep.subr.mxu0 0.0
    %1235 = vmatpush1.msra.mxu0 %v954
    %1236 = vmatprep.subr.mxu0 0.0
    %1237 = vmatpush1.msra.mxu0 %v955
    %1238 = vmatprep.subr.mxu0 0.0
    %1239 = vmatpush1.msra.mxu0 %v956
    %1240 = vmatprep.subr.mxu0 0.0
    %1241 = vmatpush1.msra.mxu0 %v957
    %1242 = vmatprep.subr.mxu0 0.0
    %1243 = vmatpush1.msra.mxu0 %v958
    %1244 = vmatprep.subr.mxu0 0.0
    %1245 = vmatpush1.msra.mxu0 %v959
    %1246 = vmatprep.subr.mxu0 0.0
    %1247 = vmatpush1.msra.mxu0 %v960
    %1248 = vmatprep.subr.mxu0 0.0
    %1249 = vmatpush1.msra.mxu0 %v961
    %1250 = vmatprep.subr.mxu0 0.0
    %1251 = vmatpush1.msra.mxu0 %v962
    %1252 = vmatprep.subr.mxu0 0.0
    %1253 = vmatpush1.msra.mxu0 %v963
    %1254 = vmatprep.subr.mxu0 0.0
    %1255 = vmatpush1.msra.mxu0 %v964
    %1256 = vmatprep.subr.mxu0 0.0
    %1257 = vmatpush1.msra.mxu0 %v965
    %1258 = vmatprep.subr.mxu0 0.0
    %1259 = vmatpush1.msra.mxu0 %v966
    %1260 = vmatprep.subr.mxu0 0.0
    %1261 = vmatpush1.msra.mxu0 %v967
    %1262 = vmatprep.subr.mxu0 0.0
    %1263 = vmatpush1.msra.mxu0 %v968
    %1264 = vmatprep.subr.mxu0 0.0
    %1265 = vmatpush1.msra.mxu0 %v969
    %1266 = vmatprep.mubr.f32.mxu0 %v765
    %1267 = vmatmul.mubr.f32.gmra.mrb[0].mxu0 %v764
    %v1268 = vpop.f32.mrb[0].mxu0
    %v1269 = vadd.f32 %v1124, %v1268
    %v1270 = vpop.f32.mrb[0].mxu0
    %1271 = vmatprep.mubr.f32.mxu0 %v774
    %1272 = vmatmul.mubr.f32.gmra.mrb[0].mxu0 %v773
    %v1273 = vpop.f32.mrb[0].mxu0
    %v1274 = vadd.f32 %v1129, %v1273
    %v1275 = vpop.f32.mrb[0].mxu0
    %1276 = vmatprep.mubr.f32.mxu0 %v783
    %1277 = vmatmul.mubr.f32.gmra.mrb[0].mxu0 %v782
    %v1278 = vpop.f32.mrb[0].mxu0
    %v1279 = vadd.f32 %v1134, %v1278
    %v1280 = vpop.f32.mrb[0].mxu0
    %1281 = vmatprep.mubr.f32.mxu0 %v792
    %1282 = vmatmul.mubr.f32.gmra.mrb[0].mxu0 %v791
    %v1283 = vpop.f32.mrb[0].mxu0
    %v1284 = vadd.f32 %v1139, %v1283
    %v1285 = vpop.f32.mrb[0].mxu0
    %1286 = vmatprep.mubr.f32.mxu0 %v801
    %1287 = vmatmul.mubr.f32.gmra.mrb[0].mxu0 %v800
    %v1288 = vpop.f32.mrb[0].mxu0
    %v1289 = vadd.f32 %v1144, %v1288
    %v1290 = vpop.f32.mrb[0].mxu0
    %1291 = vmatprep.mubr.f32.mxu0 %v810
    %1292 = vmatmul.mubr.f32.gmra.mrb[0].mxu0 %v809
    %v1293 = vpop.f32.mrb[0].mxu0
    %v1294 = vadd.f32 %v1149, %v1293
    %v1295 = vpop.f32.mrb[0].mxu0
    %1296 = vmatprep.mubr.f32.mxu0 %v819
    %1297 = vmatmul.mubr.f32.gmra.mrb[0].mxu0 %v818
    %v1298 = vpop.f32.mrb[0].mxu0
    %v1299 = vadd.f32 %v1154, %v1298
    %v1300 = vpop.f32.mrb[0].mxu0
    %1301 = vmatprep.mubr.f32.mxu0 %v828
    %1302 = vmatmul.mubr.f32.gmra.mrb[0].mxu0 %v827
    %v1303 = vpop.f32.mrb[0].mxu0
    %v1304 = vadd.f32 %v1159, %v1303
    %v1305 = vpop.f32.mrb[0].mxu0
    %1306 = vmatprep.mubr.f32.mxu0 %v837
    %1307 = vmatmul.mubr.f32.gmra.mrb[0].mxu0 %v836
    %v1308 = vpop.f32.mrb[0].mxu0
    %v1309 = vadd.f32 %v1164, %v1308
    %v1310 = vpop.f32.mrb[0].mxu0
    %1311 = vmatprep.mubr.f32.mxu0 %v846
    %1312 = vmatmul.mubr.f32.gmra.mrb[0].mxu0 %v845
    %v1313 = vpop.f32.mrb[0].mxu0
    %v1314 = vadd.f32 %v1169, %v1313
    %v1315 = vpop.f32.mrb[0].mxu0
    %1316 = vmatprep.mubr.f32.mxu0 %v855
    %1317 = vmatmul.mubr.f32.gmra.mrb[0].mxu0 %v854
    %v1318 = vpop.f32.mrb[0].mxu0
    %v1319 = vadd.f32 %v1174, %v1318
    %v1320 = vpop.f32.mrb[0].mxu0
    %1321 = vmatprep.mubr.f32.mxu0 %v864
    %1322 = vmatmul.mubr.f32.gmra.mrb[0].mxu0 %v863
    %v1323 = vpop.f32.mrb[0].mxu0
    %v1324 = vadd.f32 %v1179, %v1323
    %v1325 = vpop.f32.mrb[0].mxu0
    %1326 = vmatprep.mubr.f32.mxu0 %v873
    %1327 = vmatmul.mubr.f32.gmra.mrb[0].mxu0 %v872
    %v1328 = vpop.f32.mrb[0].mxu0
    %v1329 = vadd.f32 %v1184, %v1328
    %v1330 = vpop.f32.mrb[0].mxu0
    %1331 = vmatprep.mubr.f32.mxu0 %v882
    %1332 = vmatmul.mubr.f32.gmra.mrb[0].mxu0 %v881
    %v1333 = vpop.f32.mrb[0].mxu0
    %v1334 = vadd.f32 %v1189, %v1333
    %v1335 = vpop.f32.mrb[0].mxu0
    %1336 = vmatprep.mubr.f32.mxu0 %v891
    %1337 = vmatmul.mubr.f32.gmra.mrb[0].mxu0 %v890
    %v1338 = vpop.f32.mrb[0].mxu0
    %v1339 = vadd.f32 %v1194, %v1338
    %v1340 = vpop.f32.mrb[0].mxu0
    %1341 = vmatprep.mubr.f32.mxu0 %v900
    %1342 = vmatmul.mubr.f32.gmra.mrb[0].mxu0 %v899
    %v1343 = vpop.f32.mrb[0].mxu0
    %v1344 = vadd.f32 %v1199, %v1343
    %v1345 = vpop.f32.mrb[0].mxu0
    %1346 = vdwg.mxu0
    %1347 = vmatprep.subr.mxu0 0.0
    %1348 = vmatpush1.msra.mxu0 %v970
    %1349 = vmatprep.subr.mxu0 0.0
    %1350 = vmatpush1.msra.mxu0 %v971
    %1351 = vmatprep.subr.mxu0 0.0
    %1352 = vmatpush1.msra.mxu0 %v972
    %1353 = vmatprep.subr.mxu0 0.0
    %1354 = vmatpush1.msra.mxu0 %v973
    %1355 = vmatprep.subr.mxu0 0.0
    %1356 = vmatpush1.msra.mxu0 %v974
    %1357 = vmatprep.subr.mxu0 0.0
    %1358 = vmatpush1.msra.mxu0 %v975
    %1359 = vmatprep.subr.mxu0 0.0
    %1360 = vmatpush1.msra.mxu0 %v976
    %1361 = vmatprep.subr.mxu0 0.0
    %1362 = vmatpush1.msra.mxu0 %v977
    %1363 = vmatprep.subr.mxu0 0.0
    %1364 = vmatpush1.msra.mxu0 %v978
    %1365 = vmatprep.subr.mxu0 0.0
    %1366 = vmatpush1.msra.mxu0 %v979
    %1367 = vmatprep.subr.mxu0 0.0
    %1368 = vmatpush1.msra.mxu0 %v980
    %1369 = vmatprep.subr.mxu0 0.0
    %1370 = vmatpush1.msra.mxu0 %v981
    %1371 = vmatprep.subr.mxu0 0.0
    %1372 = vmatpush1.msra.mxu0 %v982
    %1373 = vmatprep.subr.mxu0 0.0
    %1374 = vmatpush1.msra.mxu0 %v983
    %1375 = vmatprep.subr.mxu0 0.0
    %1376 = vmatpush1.msra.mxu0 %v984
    %1377 = vmatprep.subr.mxu0 0.0
    %1378 = vmatpush1.msra.mxu0 %v985
    %1379 = vmatprep.subr.mxu0 0.0
    %1380 = vmatpush1.msra.mxu0 %v986
    %1381 = vmatprep.subr.mxu0 0.0
    %1382 = vmatpush1.msra.mxu0 %v987
    %1383 = vmatprep.subr.mxu0 0.0
    %1384 = vmatpush1.msra.mxu0 %v988
    %1385 = vmatprep.subr.mxu0 0.0
    %1386 = vmatpush1.msra.mxu0 %v989
    %1387 = vmatprep.subr.mxu0 0.0
    %1388 = vmatpush1.msra.mxu0 %v990
    %1389 = vmatprep.subr.mxu0 0.0
    %1390 = vmatpush1.msra.mxu0 %v991
    %1391 = vmatprep.subr.mxu0 0.0
    %1392 = vmatpush1.msra.mxu0 %v992
    %1393 = vmatprep.subr.mxu0 0.0
    %1394 = vmatpush1.msra.mxu0 %v993
    %1395 = vmatprep.subr.mxu0 0.0
    %1396 = vmatpush1.msra.mxu0 %v994
    %1397 = vmatprep.subr.mxu0 0.0
    %1398 = vmatpush1.msra.mxu0 %v995
    %1399 = vmatprep.subr.mxu0 0.0
    %1400 = vmatpush1.msra.mxu0 %v996
    %1401 = vmatprep.subr.mxu0 0.0
    %1402 = vmatpush1.msra.mxu0 %v997
    %1403 = vmatprep.subr.mxu0 0.0
    %1404 = vmatpush1.msra.mxu0 %v998
    %1405 = vmatprep.subr.mxu0 0.0
    %1406 = vmatpush1.msra.mxu0 %v999
    %1407 = vmatprep.subr.mxu0 0.0
    %1408 = vmatpush1.msra.mxu0 %v1000
    %1409 = vmatprep.subr.mxu0 0.0
    %1410 = vmatpush1.msra.mxu0 %v1001
    %1411 = vmatprep.mubr.f32.mxu0 %v767
    %1412 = vmatmul.mubr.f32.gmra.mrb[0].mxu0 %v766
    %v1413 = vpop.f32.mrb[0].mxu0
    %v1414 = vadd.f32 %v1269, %v1413
    %v1415 = vpop.f32.mrb[0].mxu0
    %1416 = vmatprep.mubr.f32.mxu0 %v776
    %1417 = vmatmul.mubr.f32.gmra.mrb[0].mxu0 %v775
    %v1418 = vpop.f32.mrb[0].mxu0
    %v1419 = vadd.f32 %v1274, %v1418
    %v1420 = vpop.f32.mrb[0].mxu0
    %1421 = vmatprep.mubr.f32.mxu0 %v785
    %1422 = vmatmul.mubr.f32.gmra.mrb[0].mxu0 %v784
    %v1423 = vpop.f32.mrb[0].mxu0
    %v1424 = vadd.f32 %v1279, %v1423
    %v1425 = vpop.f32.mrb[0].mxu0
    %1426 = vmatprep.mubr.f32.mxu0 %v794
    %1427 = vmatmul.mubr.f32.gmra.mrb[0].mxu0 %v793
    %v1428 = vpop.f32.mrb[0].mxu0
    %v1429 = vadd.f32 %v1284, %v1428
    %v1430 = vpop.f32.mrb[0].mxu0
    %1431 = vmatprep.mubr.f32.mxu0 %v803
    %1432 = vmatmul.mubr.f32.gmra.mrb[0].mxu0 %v802
    %v1433 = vpop.f32.mrb[0].mxu0
    %v1434 = vadd.f32 %v1289, %v1433
    %v1435 = vpop.f32.mrb[0].mxu0
    %1436 = vmatprep.mubr.f32.mxu0 %v812
    %1437 = vmatmul.mubr.f32.gmra.mrb[0].mxu0 %v811
    %v1438 = vpop.f32.mrb[0].mxu0
    %v1439 = vadd.f32 %v1294, %v1438
    %v1440 = vpop.f32.mrb[0].mxu0
    %1441 = vmatprep.mubr.f32.mxu0 %v821
    %1442 = vmatmul.mubr.f32.gmra.mrb[0].mxu0 %v820
    %v1443 = vpop.f32.mrb[0].mxu0
    %v1444 = vadd.f32 %v1299, %v1443
    %v1445 = vpop.f32.mrb[0].mxu0
    %1446 = vmatprep.mubr.f32.mxu0 %v830
    %1447 = vmatmul.mubr.f32.gmra.mrb[0].mxu0 %v829
    %v1448 = vpop.f32.mrb[0].mxu0
    %v1449 = vadd.f32 %v1304, %v1448
    %v1450 = vpop.f32.mrb[0].mxu0
    %1451 = vmatprep.mubr.f32.mxu0 %v839
    %1452 = vmatmul.mubr.f32.gmra.mrb[0].mxu0 %v838
    %v1453 = vpop.f32.mrb[0].mxu0
    %v1454 = vadd.f32 %v1309, %v1453
    %v1455 = vpop.f32.mrb[0].mxu0
    %1456 = vmatprep.mubr.f32.mxu0 %v848
    %1457 = vmatmul.mubr.f32.gmra.mrb[0].mxu0 %v847
    %v1458 = vpop.f32.mrb[0].mxu0
    %v1459 = vadd.f32 %v1314, %v1458
    %v1460 = vpop.f32.mrb[0].mxu0
    %1461 = vmatprep.mubr.f32.mxu0 %v857
    %1462 = vmatmul.mubr.f32.gmra.mrb[0].mxu0 %v856
    %v1463 = vpop.f32.mrb[0].mxu0
    %v1464 = vadd.f32 %v1319, %v1463
    %v1465 = vpop.f32.mrb[0].mxu0
    %1466 = vmatprep.mubr.f32.mxu0 %v866
    %1467 = vmatmul.mubr.f32.gmra.mrb[0].mxu0 %v865
    %v1468 = vpop.f32.mrb[0].mxu0
    %v1469 = vadd.f32 %v1324, %v1468
    %v1470 = vpop.f32.mrb[0].mxu0
    %1471 = vmatprep.mubr.f32.mxu0 %v875
    %1472 = vmatmul.mubr.f32.gmra.mrb[0].mxu0 %v874
    %v1473 = vpop.f32.mrb[0].mxu0
    %v1474 = vadd.f32 %v1329, %v1473
    %v1475 = vpop.f32.mrb[0].mxu0
    %1476 = vmatprep.mubr.f32.mxu0 %v884
    %1477 = vmatmul.mubr.f32.gmra.mrb[0].mxu0 %v883
    %v1478 = vpop.f32.mrb[0].mxu0
    %v1479 = vadd.f32 %v1334, %v1478
    %v1480 = vpop.f32.mrb[0].mxu0
    %1481 = vmatprep.mubr.f32.mxu0 %v893
    %1482 = vmatmul.mubr.f32.gmra.mrb[0].mxu0 %v892
    %v1483 = vpop.f32.mrb[0].mxu0
    %v1484 = vadd.f32 %v1339, %v1483
    %v1485 = vpop.f32.mrb[0].mxu0
    %1486 = vmatprep.mubr.f32.mxu0 %v902
    %1487 = vmatmul.mubr.f32.gmra.mrb[0].mxu0 %v901
    %v1488 = vpop.f32.mrb[0].mxu0
    %v1489 = vadd.f32 %v1344, %v1488
    %v1490 = vpop.f32.mrb[0].mxu0
    %1491 = vdwg.mxu0
    %1492 = vmatprep.subr.mxu0 0.0
    %1493 = vmatpush1.msra.mxu0 %v1002
    %1494 = vmatprep.subr.mxu0 0.0
    %1495 = vmatpush1.msra.mxu0 %v1003
    %1496 = vmatprep.subr.mxu0 0.0
    %1497 = vmatpush1.msra.mxu0 %v1004
    %1498 = vmatprep.subr.mxu0 0.0
    %1499 = vmatpush1.msra.mxu0 %v1005
    %1500 = vmatprep.subr.mxu0 0.0
    %1501 = vmatpush1.msra.mxu0 %v1006
    %1502 = vmatprep.subr.mxu0 0.0
    %1503 = vmatpush1.msra.mxu0 %v1007
    %1504 = vmatprep.subr.mxu0 0.0
    %1505 = vmatpush1.msra.mxu0 %v1008
    %1506 = vmatprep.subr.mxu0 0.0
    %1507 = vmatpush1.msra.mxu0 %v1009
    %1508 = vmatprep.subr.mxu0 0.0
    %1509 = vmatpush1.msra.mxu0 %v1010
    %1510 = vmatprep.subr.mxu0 0.0
    %1511 = vmatpush1.msra.mxu0 %v1011
    %1512 = vmatprep.subr.mxu0 0.0
    %1513 = vmatpush1.msra.mxu0 %v1012
    %1514 = vmatprep.subr.mxu0 0.0
    %1515 = vmatpush1.msra.mxu0 %v1013
    %1516 = vmatprep.subr.mxu0 0.0
    %1517 = vmatpush1.msra.mxu0 %v1014
    %1518 = vmatprep.subr.mxu0 0.0
    %1519 = vmatpush1.msra.mxu0 %v1015
    %1520 = vmatprep.subr.mxu0 0.0
    %1521 = vmatpush1.msra.mxu0 %v1016
    %1522 = vmatprep.subr.mxu0 0.0
    %1523 = vmatpush1.msra.mxu0 %v1017
    %1524 = vmatprep.subr.mxu0 0.0
    %1525 = vmatpush1.msra.mxu0 %v1018
    %1526 = vmatprep.subr.mxu0 0.0
    %1527 = vmatpush1.msra.mxu0 %v1019
    %1528 = vmatprep.subr.mxu0 0.0
    %1529 = vmatpush1.msra.mxu0 %v1020
    %1530 = vmatprep.subr.mxu0 0.0
    %1531 = vmatpush1.msra.mxu0 %v1021
    %1532 = vmatprep.subr.mxu0 0.0
    %1533 = vmatpush1.msra.mxu0 %v1022
    %1534 = vmatprep.subr.mxu0 0.0
    %1535 = vmatpush1.msra.mxu0 %v1023
    %1536 = vmatprep.subr.mxu0 0.0
    %1537 = vmatpush1.msra.mxu0 %v1024
    %1538 = vmatprep.subr.mxu0 0.0
    %1539 = vmatpush1.msra.mxu0 %v1025
    %1540 = vmatprep.subr.mxu0 0.0
    %1541 = vmatpush1.msra.mxu0 %v1026
    %1542 = vmatprep.subr.mxu0 0.0
    %1543 = vmatpush1.msra.mxu0 %v1027
    %1544 = vmatprep.subr.mxu0 0.0
    %1545 = vmatpush1.msra.mxu0 %v1028
    %1546 = vmatprep.subr.mxu0 0.0
    %1547 = vmatpush1.msra.mxu0 %v1029
    %1548 = vmatprep.subr.mxu0 0.0
    %1549 = vmatpush1.msra.mxu0 %v1030
    %1550 = vmatprep.subr.mxu0 0.0
    %1551 = vmatpush1.msra.mxu0 %v1031
    %1552 = vmatprep.subr.mxu0 0.0
    %1553 = vmatpush1.msra.mxu0 %v1032
    %1554 = vmatprep.subr.mxu0 0.0
    %1555 = vmatpush1.msra.mxu0 %v1033
    %1556 = vmatprep.mubr.f32.mxu0 %v769
    %1557 = vmatmul.mubr.f32.gmra.mrb[0].mxu0 %v768
    %v1558 = vpop.f32.mrb[0].mxu0
    %v1559 = vadd.f32 %v1414, %v1558
    %v1560 = vpop.f32.mrb[0].mxu0
    %1561 = vmatprep.mubr.f32.mxu0 %v778
    %1562 = vmatmul.mubr.f32.gmra.mrb[0].mxu0 %v777
    %v1563 = vpop.f32.mrb[0].mxu0
    %v1564 = vadd.f32 %v1419, %v1563
    %v1565 = vpop.f32.mrb[0].mxu0
    %1566 = vmatprep.mubr.f32.mxu0 %v787
    %1567 = vmatmul.mubr.f32.gmra.mrb[0].mxu0 %v786
    %v1568 = vpop.f32.mrb[0].mxu0
    %v1569 = vadd.f32 %v1424, %v1568
    %v1570 = vpop.f32.mrb[0].mxu0
    %1571 = vmatprep.mubr.f32.mxu0 %v796
    %1572 = vmatmul.mubr.f32.gmra.mrb[0].mxu0 %v795
    %v1573 = vpop.f32.mrb[0].mxu0
    %v1574 = vadd.f32 %v1429, %v1573
    %v1575 = vpop.f32.mrb[0].mxu0
    %1576 = vmatprep.mubr.f32.mxu0 %v805
    %1577 = vmatmul.mubr.f32.gmra.mrb[0].mxu0 %v804
    %v1578 = vpop.f32.mrb[0].mxu0
    %v1579 = vadd.f32 %v1434, %v1578
    %v1580 = vpop.f32.mrb[0].mxu0
    %1581 = vmatprep.mubr.f32.mxu0 %v814
    %1582 = vmatmul.mubr.f32.gmra.mrb[0].mxu0 %v813
    %v1583 = vpop.f32.mrb[0].mxu0
    %v1584 = vadd.f32 %v1439, %v1583
    %v1585 = vpop.f32.mrb[0].mxu0
    %1586 = vmatprep.mubr.f32.mxu0 %v823
    %1587 = vmatmul.mubr.f32.gmra.mrb[0].mxu0 %v822
    %v1588 = vpop.f32.mrb[0].mxu0
    %v1589 = vadd.f32 %v1444, %v1588
    %v1590 = vpop.f32.mrb[0].mxu0
    %1591 = vmatprep.mubr.f32.mxu0 %v832
    %1592 = vmatmul.mubr.f32.gmra.mrb[0].mxu0 %v831
    %v1593 = vpop.f32.mrb[0].mxu0
    %v1594 = vadd.f32 %v1449, %v1593
    %v1595 = vpop.f32.mrb[0].mxu0
    %1596 = vmatprep.mubr.f32.mxu0 %v841
    %1597 = vmatmul.mubr.f32.gmra.mrb[0].mxu0 %v840
    %v1598 = vpop.f32.mrb[0].mxu0
    %v1599 = vadd.f32 %v1454, %v1598
    %v1600 = vpop.f32.mrb[0].mxu0
    %1601 = vmatprep.mubr.f32.mxu0 %v850
    %1602 = vmatmul.mubr.f32.gmra.mrb[0].mxu0 %v849
    %v1603 = vpop.f32.mrb[0].mxu0
    %v1604 = vadd.f32 %v1459, %v1603
    %v1605 = vpop.f32.mrb[0].mxu0
    %1606 = vmatprep.mubr.f32.mxu0 %v859
    %1607 = vmatmul.mubr.f32.gmra.mrb[0].mxu0 %v858
    %v1608 = vpop.f32.mrb[0].mxu0
    %v1609 = vadd.f32 %v1464, %v1608
    %v1610 = vpop.f32.mrb[0].mxu0
    %1611 = vmatprep.mubr.f32.mxu0 %v868
    %1612 = vmatmul.mubr.f32.gmra.mrb[0].mxu0 %v867
    %v1613 = vpop.f32.mrb[0].mxu0
    %v1614 = vadd.f32 %v1469, %v1613
    %v1615 = vpop.f32.mrb[0].mxu0
    %1616 = vmatprep.mubr.f32.mxu0 %v877
    %1617 = vmatmul.mubr.f32.gmra.mrb[0].mxu0 %v876
    %v1618 = vpop.f32.mrb[0].mxu0
    %v1619 = vadd.f32 %v1474, %v1618
    %v1620 = vpop.f32.mrb[0].mxu0
    %1621 = vmatprep.mubr.f32.mxu0 %v886
    %1622 = vmatmul.mubr.f32.gmra.mrb[0].mxu0 %v885
    %v1623 = vpop.f32.mrb[0].mxu0
    %v1624 = vadd.f32 %v1479, %v1623
    %v1625 = vpop.f32.mrb[0].mxu0
    %1626 = vmatprep.mubr.f32.mxu0 %v895
    %1627 = vmatmul.mubr.f32.gmra.mrb[0].mxu0 %v894
    %v1628 = vpop.f32.mrb[0].mxu0
    %v1629 = vadd.f32 %v1484, %v1628
    %v1630 = vpop.f32.mrb[0].mxu0
    %1631 = vmatprep.mubr.f32.mxu0 %v904
    %1632 = vmatmul.mubr.f32.gmra.mrb[0].mxu0 %v903
    %v1633 = vpop.f32.mrb[0].mxu0
    %v1634 = vadd.f32 %v1489, %v1633
    %v1635 = vpop.f32.mrb[0].mxu0
    %1636 = vdwg.mxu0
    %1637 = vmatprep.subr.mxu0 0.0
    %1638 = vmatpush1.msra.mxu0 %v1034
    %1639 = vmatprep.subr.mxu0 0.0
    %1640 = vmatpush1.msra.mxu0 %v1035
    %1641 = vmatprep.subr.mxu0 0.0
    %1642 = vmatpush1.msra.mxu0 %v1036
    %1643 = vmatprep.subr.mxu0 0.0
    %1644 = vmatpush1.msra.mxu0 %v1037
    %1645 = vmatprep.subr.mxu0 0.0
    %1646 = vmatpush1.msra.mxu0 %v1038
    %1647 = vmatprep.subr.mxu0 0.0
    %1648 = vmatpush1.msra.mxu0 %v1039
    %1649 = vmatprep.subr.mxu0 0.0
    %1650 = vmatpush1.msra.mxu0 %v1040
    %1651 = vmatprep.subr.mxu0 0.0
    %1652 = vmatpush1.msra.mxu0 %v1041
    %1653 = vmatprep.subr.mxu0 0.0
    %1654 = vmatpush1.msra.mxu0 %v1042
    %1655 = vmatprep.subr.mxu0 0.0
    %1656 = vmatpush1.msra.mxu0 %v1043
    %1657 = vmatprep.subr.mxu0 0.0
    %1658 = vmatpush1.msra.mxu0 %v1044
    %1659 = vmatprep.subr.mxu0 0.0
    %1660 = vmatpush1.msra.mxu0 %v1045
    %1661 = vmatprep.subr.mxu0 0.0
    %1662 = vmatpush1.msra.mxu0 %v1046
    %1663 = vmatprep.subr.mxu0 0.0
    %1664 = vmatpush1.msra.mxu0 %v1047
    %1665 = vmatprep.subr.mxu0 0.0
    %1666 = vmatpush1.msra.mxu0 %v1048
    %1667 = vmatprep.subr.mxu0 0.0
    %1668 = vmatpush1.msra.mxu0 %v1049
    %1669 = vmatprep.subr.mxu0 0.0
    %1670 = vmatpush1.msra.mxu0 0.0
    %1671 = vmatprep.subr.mxu0 0.0
    %1672 = vmatpush1.msra.mxu0 0.0
    %1673 = vmatprep.subr.mxu0 0.0
    %1674 = vmatpush1.msra.mxu0 0.0
    %1675 = vmatprep.subr.mxu0 0.0
    %1676 = vmatpush1.msra.mxu0 0.0
    %1677 = vmatprep.subr.mxu0 0.0
    %1678 = vmatpush1.msra.mxu0 0.0
    %1679 = vmatprep.subr.mxu0 0.0
    %1680 = vmatpush1.msra.mxu0 0.0
    %1681 = vmatprep.subr.mxu0 0.0
    %1682 = vmatpush1.msra.mxu0 0.0
    %1683 = vmatprep.subr.mxu0 0.0
    %1684 = vmatpush1.msra.mxu0 0.0
    %1685 = vmatprep.subr.mxu0 0.0
    %1686 = vmatpush1.msra.mxu0 0.0
    %1687 = vmatprep.subr.mxu0 0.0
    %1688 = vmatpush1.msra.mxu0 0.0
    %1689 = vmatprep.subr.mxu0 0.0
    %1690 = vmatpush1.msra.mxu0 0.0
    %1691 = vmatprep.subr.mxu0 0.0
    %1692 = vmatpush1.msra.mxu0 0.0
    %1693 = vmatprep.subr.mxu0 0.0
    %1694 = vmatpush1.msra.mxu0 0.0
    %1695 = vmatprep.subr.mxu0 0.0
    %1696 = vmatpush1.msra.mxu0 0.0
    %1697 = vmatprep.subr.mxu0 0.0
    %1698 = vmatpush1.msra.mxu0 0.0
    %1699 = vmatprep.subr.mxu0 0.0
    %1700 = vmatpush1.msra.mxu0 0.0
    %1701 = vmatprep.mubr.f32.mxu0 0.0
    %1702 = vmatmul.mubr.f32.gmra.mrb[0].mxu0 %v770
    %v1703 = vpop.f32.mrb[0].mxu0
    %v1704 = vadd.f32 %v1559, %v1703
    %v1705 = vpop.f32.mrb[0].mxu0
    %1706 = vmatprep.mubr.f32.mxu0 0.0
    %1707 = vmatmul.mubr.f32.gmra.mrb[0].mxu0 %v779
    %v1708 = vpop.f32.mrb[0].mxu0
    %v1709 = vadd.f32 %v1564, %v1708
    %v1710 = vpop.f32.mrb[0].mxu0
    %1711 = vmatprep.mubr.f32.mxu0 0.0
    %1712 = vmatmul.mubr.f32.gmra.mrb[0].mxu0 %v788
    %v1713 = vpop.f32.mrb[0].mxu0
    %v1714 = vadd.f32 %v1569, %v1713
    %v1715 = vpop.f32.mrb[0].mxu0
    %1716 = vmatprep.mubr.f32.mxu0 0.0
    %1717 = vmatmul.mubr.f32.gmra.mrb[0].mxu0 %v797
    %v1718 = vpop.f32.mrb[0].mxu0
    %v1719 = vadd.f32 %v1574, %v1718
    %v1720 = vpop.f32.mrb[0].mxu0
    %1721 = vmatprep.mubr.f32.mxu0 0.0
    %1722 = vmatmul.mubr.f32.gmra.mrb[0].mxu0 %v806
    %v1723 = vpop.f32.mrb[0].mxu0
    %v1724 = vadd.f32 %v1579, %v1723
    %v1725 = vpop.f32.mrb[0].mxu0
    %1726 = vmatprep.mubr.f32.mxu0 0.0
    %1727 = vmatmul.mubr.f32.gmra.mrb[0].mxu0 %v815
    %v1728 = vpop.f32.mrb[0].mxu0
    %v1729 = vadd.f32 %v1584, %v1728
    %v1730 = vpop.f32.mrb[0].mxu0
    %1731 = vmatprep.mubr.f32.mxu0 0.0
    %1732 = vmatmul.mubr.f32.gmra.mrb[0].mxu0 %v824
    %v1733 = vpop.f32.mrb[0].mxu0
    %v1734 = vadd.f32 %v1589, %v1733
    %v1735 = vpop.f32.mrb[0].mxu0
    %1736 = vmatprep.mubr.f32.mxu0 0.0
    %1737 = vmatmul.mubr.f32.gmra.mrb[0].mxu0 %v833
    %v1738 = vpop.f32.mrb[0].mxu0
    %v1739 = vadd.f32 %v1594, %v1738
    %v1740 = vpop.f32.mrb[0].mxu0
    %1741 = vmatprep.mubr.f32.mxu0 0.0
    %1742 = vmatmul.mubr.f32.gmra.mrb[0].mxu0 %v842
    %v1743 = vpop.f32.mrb[0].mxu0
    %v1744 = vadd.f32 %v1599, %v1743
    %v1745 = vpop.f32.mrb[0].mxu0
    %1746 = vmatprep.mubr.f32.mxu0 0.0
    %1747 = vmatmul.mubr.f32.gmra.mrb[0].mxu0 %v851
    %v1748 = vpop.f32.mrb[0].mxu0
    %v1749 = vadd.f32 %v1604, %v1748
    %v1750 = vpop.f32.mrb[0].mxu0
    %1751 = vmatprep.mubr.f32.mxu0 0.0
    %1752 = vmatmul.mubr.f32.gmra.mrb[0].mxu0 %v860
    %v1753 = vpop.f32.mrb[0].mxu0
    %v1754 = vadd.f32 %v1609, %v1753
    %v1755 = vpop.f32.mrb[0].mxu0
    %1756 = vmatprep.mubr.f32.mxu0 0.0
    %1757 = vmatmul.mubr.f32.gmra.mrb[0].mxu0 %v869
    %v1758 = vpop.f32.mrb[0].mxu0
    %v1759 = vadd.f32 %v1614, %v1758
    %v1760 = vpop.f32.mrb[0].mxu0
    %1761 = vmatprep.mubr.f32.mxu0 0.0
    %1762 = vmatmul.mubr.f32.gmra.mrb[0].mxu0 %v878
    %v1763 = vpop.f32.mrb[0].mxu0
    %v1764 = vadd.f32 %v1619, %v1763
    %v1765 = vpop.f32.mrb[0].mxu0
    %1766 = vmatprep.mubr.f32.mxu0 0.0
    %1767 = vmatmul.mubr.f32.gmra.mrb[0].mxu0 %v887
    %v1768 = vpop.f32.mrb[0].mxu0
    %v1769 = vadd.f32 %v1624, %v1768
    %v1770 = vpop.f32.mrb[0].mxu0
    %1771 = vmatprep.mubr.f32.mxu0 0.0
    %1772 = vmatmul.mubr.f32.gmra.mrb[0].mxu0 %v896
    %v1773 = vpop.f32.mrb[0].mxu0
    %v1774 = vadd.f32 %v1629, %v1773
    %v1775 = vpop.f32.mrb[0].mxu0
    %1776 = vmatprep.mubr.f32.mxu0 0.0
    %1777 = vmatmul.mubr.f32.gmra.mrb[0].mxu0 %v905
    %v1778 = vpop.f32.mrb[0].mxu0
    %v1779 = vadd.f32 %v1634, %v1778
    %v1780 = vpop.f32.mrb[0].mxu0
    %1781 = vdwg.mxu0
    %v1782 = vmax.f32 %v1704, 0.0
    %v1783 = vmax.f32 %v1709, 0.0
    %v1784 = vmax.f32 %v1714, 0.0
    %v1785 = vmax.f32 %v1719, 0.0
    %v1786 = vmax.f32 %v1724, 0.0
    %v1787 = vmax.f32 %v1729, 0.0
    %v1788 = vmax.f32 %v1734, 0.0
    %v1789 = vmax.f32 %v1739, 0.0
    %v1790 = vmax.f32 %v1744, 0.0
    %v1791 = vmax.f32 %v1749, 0.0
    %v1792 = vmax.f32 %v1754, 0.0
    %v1793 = vmax.f32 %v1759, 0.0
    %v1794 = vmax.f32 %v1764, 0.0
    %v1795 = vmax.f32 %v1769, 0.0
    %v1796 = vmax.f32 %v1774, 0.0
    %v1797 = vmax.f32 %v1779, 0.0
    %v1798 = vld [vmem:[%s5] sm:$0xff]
    %v1799 = vld [vmem:[%s5 + $0x8] sm:$0xff]
    %v1800 = vld [vmem:[%s6] sm:$0x1]
    %v1802 = vlaneseq
    %v1803 = vshrl.u32 %v1802, 7
    %v1804 = vsub.s32 0, %v1803
    %v1805 = vrot.slane %v1800, %v1804
    %v1808 = vsel %vm270, %v1782, 0
    %v1811 = vsel %vm270, %v1783, 0
    %v1814 = vsel %vm270, %v1784, 0
    %v1817 = vsel %vm270, %v1785, 0
    %v1820 = vsel %vm270, %v1786, 0
    %v1823 = vsel %vm270, %v1787, 0
    %v1826 = vsel %vm270, %v1788, 0
    %v1829 = vsel %vm270, %v1789, 0
    %v1832 = vsel %vm270, %v1790, 0
    %v1835 = vsel %vm270, %v1791, 0
    %v1838 = vsel %vm270, %v1792, 0
    %v1841 = vsel %vm270, %v1793, 0
    %v1844 = vsel %vm270, %v1794, 0
    %v1847 = vsel %vm270, %v1795, 0
    %v1850 = vsel %vm270, %v1796, 0
    %v1853 = vsel %vm270, %v1797, 0
    %1855 = vmatprep.subr.mxu0 0.0
    %1856 = vmatpush1.msra.mxu0 %v1798
    %1857 = vmatprep.subr.mxu0 0.0
    %1858 = vmatpush1.msra.mxu0 %v1799
    %1859 = vmatprep.subr.mxu0 0.0
    %1860 = vmatpush1.msra.mxu0 0.0
    %1861 = vmatprep.subr.mxu0 0.0
    %1862 = vmatpush1.msra.mxu0 0.0
    %1863 = vmatprep.subr.mxu0 0.0
    %1864 = vmatpush1.msra.mxu0 0.0
    %1865 = vmatprep.subr.mxu0 0.0
    %1866 = vmatpush1.msra.mxu0 0.0
    %1867 = vmatprep.subr.mxu0 0.0
    %1868 = vmatpush1.msra.mxu0 0.0
    %1869 = vmatprep.subr.mxu0 0.0
    %1870 = vmatpush1.msra.mxu0 0.0
    %1871 = vmatprep.subr.mxu0 0.0
    %1872 = vmatpush1.msra.mxu0 0.0
    %1873 = vmatprep.subr.mxu0 0.0
    %1874 = vmatpush1.msra.mxu0 0.0
    %1875 = vmatprep.subr.mxu0 0.0
    %1876 = vmatpush1.msra.mxu0 0.0
    %1877 = vmatprep.subr.mxu0 0.0
    %1878 = vmatpush1.msra.mxu0 0.0
    %1879 = vmatprep.subr.mxu0 0.0
    %1880 = vmatpush1.msra.mxu0 0.0
    %1881 = vmatprep.subr.mxu0 0.0
    %1882 = vmatpush1.msra.mxu0 0.0
    %1883 = vmatprep.subr.mxu0 0.0
    %1884 = vmatpush1.msra.mxu0 0.0
    %1885 = vmatprep.subr.mxu0 0.0
    %1886 = vmatpush1.msra.mxu0 0.0
    %1887 = vmatprep.subr.mxu0 0.0
    %1888 = vmatpush1.msra.mxu0 0.0
    %1889 = vmatprep.subr.mxu0 0.0
    %1890 = vmatpush1.msra.mxu0 0.0
    %1891 = vmatprep.subr.mxu0 0.0
    %1892 = vmatpush1.msra.mxu0 0.0
    %1893 = vmatprep.subr.mxu0 0.0
    %1894 = vmatpush1.msra.mxu0 0.0
    %1895 = vmatprep.subr.mxu0 0.0
    %1896 = vmatpush1.msra.mxu0 0.0
    %1897 = vmatprep.subr.mxu0 0.0
    %1898 = vmatpush1.msra.mxu0 0.0
    %1899 = vmatprep.subr.mxu0 0.0
    %1900 = vmatpush1.msra.mxu0 0.0
    %1901 = vmatprep.subr.mxu0 0.0
    %1902 = vmatpush1.msra.mxu0 0.0
    %1903 = vmatprep.subr.mxu0 0.0
    %1904 = vmatpush1.msra.mxu0 0.0
    %1905 = vmatprep.subr.mxu0 0.0
    %1906 = vmatpush1.msra.mxu0 0.0
    %1907 = vmatprep.subr.mxu0 0.0
    %1908 = vmatpush1.msra.mxu0 0.0
    %1909 = vmatprep.subr.mxu0 0.0
    %1910 = vmatpush1.msra.mxu0 0.0
    %1911 = vmatprep.subr.mxu0 0.0
    %1912 = vmatpush1.msra.mxu0 0.0
    %1913 = vmatprep.subr.mxu0 0.0
    %1914 = vmatpush1.msra.mxu0 0.0
    %1915 = vmatprep.subr.mxu0 0.0
    %1916 = vmatpush1.msra.mxu0 0.0
    %1917 = vmatprep.subr.mxu0 0.0
    %1918 = vmatpush1.msra.mxu0 0.0
    %1919 = vmatprep.mubr.f32.mxu0 0.0
    %1920 = vmatmul.mubr.f32.gmra.mrb[0].mxu0 %v1808
    %v1921 = vpop.f32.mrb[0].mxu0
    %v1922 = vadd.f32 %v1805, %v1921
    %v1923 = vpop.f32.mrb[0].mxu0
    %1924 = vmatprep.mubr.f32.mxu0 0.0
    %1925 = vmatmul.mubr.f32.gmra.mrb[0].mxu0 %v1811
    %v1926 = vpop.f32.mrb[0].mxu0
    %v1927 = vadd.f32 %v1805, %v1926
    %v1928 = vpop.f32.mrb[0].mxu0
    %1929 = vmatprep.mubr.f32.mxu0 0.0
    %1930 = vmatmul.mubr.f32.gmra.mrb[0].mxu0 %v1814
    %v1931 = vpop.f32.mrb[0].mxu0
    %v1932 = vadd.f32 %v1805, %v1931
    %v1933 = vpop.f32.mrb[0].mxu0
    %1934 = vmatprep.mubr.f32.mxu0 0.0
    %1935 = vmatmul.mubr.f32.gmra.mrb[0].mxu0 %v1817
    %v1936 = vpop.f32.mrb[0].mxu0
    %v1937 = vadd.f32 %v1805, %v1936
    %v1938 = vpop.f32.mrb[0].mxu0
    %1939 = vmatprep.mubr.f32.mxu0 0.0
    %1940 = vmatmul.mubr.f32.gmra.mrb[0].mxu0 %v1820
    %v1941 = vpop.f32.mrb[0].mxu0
    %v1942 = vadd.f32 %v1805, %v1941
    %v1943 = vpop.f32.mrb[0].mxu0
    %1944 = vmatprep.mubr.f32.mxu0 0.0
    %1945 = vmatmul.mubr.f32.gmra.mrb[0].mxu0 %v1823
    %v1946 = vpop.f32.mrb[0].mxu0
    %v1947 = vadd.f32 %v1805, %v1946
    %v1948 = vpop.f32.mrb[0].mxu0
    %1949 = vmatprep.mubr.f32.mxu0 0.0
    %1950 = vmatmul.mubr.f32.gmra.mrb[0].mxu0 %v1826
    %v1951 = vpop.f32.mrb[0].mxu0
    %v1952 = vadd.f32 %v1805, %v1951
    %v1953 = vpop.f32.mrb[0].mxu0
    %1954 = vmatprep.mubr.f32.mxu0 0.0
    %1955 = vmatmul.mubr.f32.gmra.mrb[0].mxu0 %v1829
    %v1956 = vpop.f32.mrb[0].mxu0
    %v1957 = vadd.f32 %v1805, %v1956
    %v1958 = vpop.f32.mrb[0].mxu0
    %1959 = vmatprep.mubr.f32.mxu0 0.0
    %1960 = vmatmul.mubr.f32.gmra.mrb[0].mxu0 %v1832
    %v1961 = vpop.f32.mrb[0].mxu0
    %v1962 = vadd.f32 %v1805, %v1961
    %v1963 = vpop.f32.mrb[0].mxu0
    %1964 = vmatprep.mubr.f32.mxu0 0.0
    %1965 = vmatmul.mubr.f32.gmra.mrb[0].mxu0 %v1835
    %v1966 = vpop.f32.mrb[0].mxu0
    %v1967 = vadd.f32 %v1805, %v1966
    %v1968 = vpop.f32.mrb[0].mxu0
    %1969 = vmatprep.mubr.f32.mxu0 0.0
    %1970 = vmatmul.mubr.f32.gmra.mrb[0].mxu0 %v1838
    %v1971 = vpop.f32.mrb[0].mxu0
    %v1972 = vadd.f32 %v1805, %v1971
    %v1973 = vpop.f32.mrb[0].mxu0
    %1974 = vmatprep.mubr.f32.mxu0 0.0
    %1975 = vmatmul.mubr.f32.gmra.mrb[0].mxu0 %v1841
    %v1976 = vpop.f32.mrb[0].mxu0
    %v1977 = vadd.f32 %v1805, %v1976
    %v1978 = vpop.f32.mrb[0].mxu0
    %1979 = vmatprep.mubr.f32.mxu0 0.0
    %1980 = vmatmul.mubr.f32.gmra.mrb[0].mxu0 %v1844
    %v1981 = vpop.f32.mrb[0].mxu0
    %v1982 = vadd.f32 %v1805, %v1981
    %v1983 = vpop.f32.mrb[0].mxu0
    %1984 = vmatprep.mubr.f32.mxu0 0.0
    %1985 = vmatmul.mubr.f32.gmra.mrb[0].mxu0 %v1847
    %v1986 = vpop.f32.mrb[0].mxu0
    %v1987 = vadd.f32 %v1805, %v1986
    %v1988 = vpop.f32.mrb[0].mxu0
    %1989 = vmatprep.mubr.f32.mxu0 0.0
    %1990 = vmatmul.mubr.f32.gmra.mrb[0].mxu0 %v1850
    %v1991 = vpop.f32.mrb[0].mxu0
    %v1992 = vadd.f32 %v1805, %v1991
    %v1993 = vpop.f32.mrb[0].mxu0
    %1994 = vmatprep.mubr.f32.mxu0 0.0
    %1995 = vmatmul.mubr.f32.gmra.mrb[0].mxu0 %v1853
    %v1996 = vpop.f32.mrb[0].mxu0
    %v1997 = vadd.f32 %v1805, %v1996
    %v1998 = vpop.f32.mrb[0].mxu0
    %1999 = vdwg.mxu0
    %v2000 = vsel %vm60, %v1922, 0.0
    %v2001 = vsel %vm60, %v1927, 0.0
    %v2002 = vadd.f32 %v2000, %v2001
    %v2003 = vsel %vm60, %v1932, 0.0
    %v2004 = vadd.f32 %v2002, %v2003
    %v2005 = vsel %vm60, %v1937, 0.0
    %v2006 = vadd.f32 %v2004, %v2005
    %v2007 = vsel %vm60, %v1942, 0.0
    %v2008 = vadd.f32 %v2006, %v2007
    %v2009 = vsel %vm60, %v1947, 0.0
    %v2010 = vadd.f32 %v2008, %v2009
    %v2011 = vsel %vm60, %v1952, 0.0
    %v2012 = vadd.f32 %v2010, %v2011
    %v2013 = vsel %vm60, %v1957, 0.0
    %v2014 = vadd.f32 %v2012, %v2013
    %v2015 = vrot.slane %v2014, 4
    %v2016 = vadd.f32 %v2014, %v2015
    %v2017 = vrot.slane %v2016, 2
    %v2018 = vadd.f32 %v2016, %v2017
    %v2019 = vrot.slane %v2018, 1
    %v2020 = vadd.f32 %v2018, %v2019
    %v2021 = vsel %vm60, %v1962, 0.0
    %v2022 = vsel %vm60, %v1967, 0.0
    %v2023 = vadd.f32 %v2021, %v2022
    %v2024 = vsel %vm60, %v1972, 0.0
    %v2025 = vadd.f32 %v2023, %v2024
    %v2026 = vsel %vm60, %v1977, 0.0
    %v2027 = vadd.f32 %v2025, %v2026
    %v2028 = vsel %vm60, %v1982, 0.0
    %v2029 = vadd.f32 %v2027, %v2028
    %v2030 = vsel %vm60, %v1987, 0.0
    %v2031 = vadd.f32 %v2029, %v2030
    %v2032 = vsel %vm60, %v1992, 0.0
    %v2033 = vadd.f32 %v2031, %v2032
    %v2034 = vsel %vm60, %v1997, 0.0
    %v2035 = vadd.f32 %v2033, %v2034
    %v2036 = vrot.slane %v2035, 4
    %v2037 = vadd.f32 %v2035, %v2036
    %v2038 = vrot.slane %v2037, 2
    %v2039 = vadd.f32 %v2037, %v2038
    %v2040 = vrot.slane %v2039, 1
    %v2041 = vadd.f32 %v2039, %v2040
    %v2042 = vmul.f32 %v2020, 0.015625
    %v2043 = vmul.f32 %v2041, 0.015625
    %v2044 = vld [vmem:[%s7] sm:$0x3]
    %v2045 = vld [vmem:[%s8] sm:$0x3]
    %v2046 = vlaneseq
    %v2047 = vshrl.u32 %v2046, 7
    %v2048 = vsub.s32 0, %v2047
    %v2049 = vrot.slane %v2044, %v2048
    %v2050 = vmul.f32 %v2042, %v2049
    %v2051 = vmul.f32 %v2043, %v2049
    %v2054 = vrot.slane %v2051, 7
    %vm2055 = vcmask 1041409
    %v2056 = vsel %vm2055, %v2054, %v2050
    %vm2058 = vcmask 254976
    %v2059 = vsel %vm2058, %v2056, 0.0
    %2060 = vadd.xlane.f32.xlu0 %v2059
    %v2061 = vpop.xlane.xlu0 %2060
    %v2062 = vmax.f32 %v2061, 0.0
    %v2063 = vlaneseq
    %v2064 = vshrl.u32 %v2063, 7
    %v2065 = vsub.s32 0, %v2064
    %v2066 = vrot.slane %v2045, %v2065
    %v2067 = vmul.f32 %v2062, %v2066
    %v2068 = vadd.f32 %v2067, 0.0
    %v2069 = vlaneseq
    %v2070 = vshrl.u32 %v2069, 7
    %v2071 = vsub.s32 1, %v2070
    %v2072 = vrot.slane %v2044, %v2071
    %v2073 = vmul.f32 %v2042, %v2072
    %v2074 = vmul.f32 %v2043, %v2072
    %v2077 = vrot.slane %v2074, 7
    %v2078 = vsel %vm2055, %v2077, %v2073
    %v2080 = vsel %vm2058, %v2078, 0.0
    %2081 = vadd.xlane.f32.xlu0 %v2080
    %v2082 = vpop.xlane.xlu0 %2081
    %v2083 = vmax.f32 %v2082, 0.0
    %v2084 = vlaneseq
    %v2085 = vshrl.u32 %v2084, 7
    %v2086 = vsub.s32 1, %v2085
    %v2087 = vrot.slane %v2045, %v2086
    %v2088 = vmul.f32 %v2083, %v2087
    %v2089 = vadd.f32 %v2068, %v2088
    %v2090 = vxor.u32 %v2089, 2147483648
    %v2091 = vmul.f32 %v2090, 1.442695
    %v2092 = vpow.pop %v2091
    %v2093 = vadd.f32 %v2092, 1.0
    %v2094 = vrcp.pop %v2093
    %v2095 = vmul.f32 1.0, %v2094
    %v2098 = vunpack.c.l.s4 1966171168
    %v2099 = vunpack.c.0.s8 %v2098
    %v2100 = vlaneseq
    %v2101 = vshrl.u32 %v2100, 7
    %v2102 = vsub.s32 %v2099, %v2101
    %v2103 = vrot.slane %v2095, %v2102
    %v2104 = vcombine.high %v2103, %v2103
    %v2106 = vunpack.c.l.s4 1966171168
    %v2107 = vunpack.c.0.s8 %v2106
    %v2108 = vlaneseq
    %v2109 = vshrl.u32 %v2108, 7
    %v2110 = vsub.s32 %v2107, %v2109
    %v2111 = vrot.slane %v2103, %v2110
    %v2113 = vunpack.c.l.s4 1966171168
    %v2114 = vunpack.c.0.s8 %v2113
    %v2115 = vlaneseq
    %v2116 = vshrl.u32 %v2115, 7
    %v2117 = vsub.s32 %v2114, %v2116
    %v2118 = vrot.slane %v2104, %v2117
    %v2119 = vlaneseq
    %v2120 = vshrl.u32 %v2119, 7
    %v2121 = vsub.s32 0, %v2120
    %v2122 = vrot.slane %v2111, %v2121
    %v2123 = vlaneseq
    %v2124 = vshrl.u32 %v2123, 7
    %v2125 = vsub.s32 0, %v2124
    %v2126 = vrot.slane %v2118, %v2125
    %v2129 = vmul.f32 %v1922, %v2122
    %v2130 = vmul.f32 %v1927, %v2122
    %v2131 = vmul.f32 %v1932, %v2122
    %v2132 = vmul.f32 %v1937, %v2122
    %v2133 = vmul.f32 %v1942, %v2122
    %v2134 = vmul.f32 %v1947, %v2122
    %v2135 = vmul.f32 %v1952, %v2122
    %v2136 = vmul.f32 %v1957, %v2122
    %v2137 = vmul.f32 %v1962, %v2126
    %v2138 = vmul.f32 %v1967, %v2126
    %v2139 = vmul.f32 %v1972, %v2126
    %v2140 = vmul.f32 %v1977, %v2126
    %v2141 = vmul.f32 %v1982, %v2126
    %v2142 = vmul.f32 %v1987, %v2126
    %v2143 = vmul.f32 %v1992, %v2126
    %v2144 = vmul.f32 %v1997, %v2126
    %v2145 = vld [vmem:[%s0] sm:$0xff]
    %v2146 = vld [vmem:[%s0 + $0x8] sm:$0xff]
    %v2147 = vld [vmem:[%s0 + $0x10] sm:$0xff]
    %v2148 = vld [vmem:[%s0 + $0x18] sm:$0xff]
    %v2149 = vld [vmem:[%s0 + $0x20] sm:$0xff]
    %v2150 = vld [vmem:[%s0 + $0x28] sm:$0xff]
    %v2151 = vld [vmem:[%s0 + $0x30] sm:$0xff]
    %v2152 = vld [vmem:[%s0 + $0x38] sm:$0xff]
    %v2153 = vld [vmem:[%s0 + $0x40] sm:$0xff]
    %v2154 = vld [vmem:[%s0 + $0x48] sm:$0xff]
    %v2155 = vld [vmem:[%s0 + $0x50] sm:$0xff]
    %v2156 = vld [vmem:[%s0 + $0x58] sm:$0xff]
    %v2157 = vld [vmem:[%s0 + $0x60] sm:$0xff]
    %v2158 = vld [vmem:[%s0 + $0x68] sm:$0xff]
    %v2159 = vld [vmem:[%s0 + $0x70] sm:$0xff]
    %v2160 = vld [vmem:[%s0 + $0x78] sm:$0xff]
    %v2161 = vadd.f32 %v2129, %v2145
    %v2162 = vadd.f32 %v2130, %v2146
    %v2163 = vadd.f32 %v2131, %v2147
    %v2164 = vadd.f32 %v2132, %v2148
    %v2165 = vadd.f32 %v2133, %v2149
    %v2166 = vadd.f32 %v2134, %v2150
    %v2167 = vadd.f32 %v2135, %v2151
    %v2168 = vadd.f32 %v2136, %v2152
    %v2169 = vadd.f32 %v2137, %v2153
    %v2170 = vadd.f32 %v2138, %v2154
    %v2171 = vadd.f32 %v2139, %v2155
    %v2172 = vadd.f32 %v2140, %v2156
    %v2173 = vadd.f32 %v2141, %v2157
    %v2174 = vadd.f32 %v2142, %v2158
    %v2175 = vadd.f32 %v2143, %v2159
    %v2176 = vadd.f32 %v2144, %v2160
    %v2177 = vmax.f32 %v2161, 0.0
    %v2178 = vmax.f32 %v2162, 0.0
    %v2179 = vmax.f32 %v2163, 0.0
    %v2180 = vmax.f32 %v2164, 0.0
    %v2181 = vmax.f32 %v2165, 0.0
    %v2182 = vmax.f32 %v2166, 0.0
    %v2183 = vmax.f32 %v2167, 0.0
    %v2184 = vmax.f32 %v2168, 0.0
    %v2185 = vmax.f32 %v2169, 0.0
    %v2186 = vmax.f32 %v2170, 0.0
    %v2187 = vmax.f32 %v2171, 0.0
    %v2188 = vmax.f32 %v2172, 0.0
    %v2189 = vmax.f32 %v2173, 0.0
    %v2190 = vmax.f32 %v2174, 0.0
    %v2191 = vmax.f32 %v2175, 0.0
    %v2192 = vmax.f32 %v2176, 0.0
    %2193 = vst.msk [vmem:[#allocation4] sm:$0xff] %vm60, %v2177
    %2194 = vst.msk [vmem:[#allocation4 + $0x8] sm:$0xff] %vm60, %v2178
    %2195 = vst.msk [vmem:[#allocation4 + $0x10] sm:$0xff] %vm60, %v2179
    %2196 = vst.msk [vmem:[#allocation4 + $0x18] sm:$0xff] %vm60, %v2180
    %2197 = vst.msk [vmem:[#allocation4 + $0x20] sm:$0xff] %vm60, %v2181
    %2198 = vst.msk [vmem:[#allocation4 + $0x28] sm:$0xff] %vm60, %v2182
    %2199 = vst.msk [vmem:[#allocation4 + $0x30] sm:$0xff] %vm60, %v2183
    %2200 = vst.msk [vmem:[#allocation4 + $0x38] sm:$0xff] %vm60, %v2184
    %2201 = vst.msk [vmem:[#allocation4 + $0x40] sm:$0xff] %vm60, %v2185
    %2202 = vst.msk [vmem:[#allocation4 + $0x48] sm:$0xff] %vm60, %v2186
    %2203 = vst.msk [vmem:[#allocation4 + $0x50] sm:$0xff] %vm60, %v2187
    %2204 = vst.msk [vmem:[#allocation4 + $0x58] sm:$0xff] %vm60, %v2188
    %2205 = vst.msk [vmem:[#allocation4 + $0x60] sm:$0xff] %vm60, %v2189
    %2206 = vst.msk [vmem:[#allocation4 + $0x68] sm:$0xff] %vm60, %v2190
    %2207 = vst.msk [vmem:[#allocation4 + $0x70] sm:$0xff] %vm60, %v2191
    %2208 = vst.msk [vmem:[#allocation4 + $0x78] sm:$0xff] %vm60, %v2192
    // Predicated region
    $region38: #{se_bottleneck_forward.1} parent=1 // pred_check
      _
    $region39: #{se_bottleneck_forward.1} parent=1 // pred_check_branch
      %2210 = sbr.rel (0) target = $region41
    $region40: #{se_bottleneck_forward.1} parent=1 // pred_region
      %s2212 = ssub.s32 2048, 2048
      %2213 = vsyncadd [#allocation5], %s2212
      %s2214 = sshll.u32 [#allocation4], 4
      %s2215 = int_to_ptr.vmem [resolvable:$true] %s2214
      %2220 = dma.vmem_to_hbm [thread:$0]  %s2215, 2048, %s9, [#allocation5], 128, 128, 8
    $region41: #{se_bottleneck_forward.1} parent=1 // pred_fallthru
      _
    // Predicated region
    $region42: #{se_bottleneck_forward.1} parent=1 // pred_check
      _
    $region43: #{se_bottleneck_forward.1} parent=1 // pred_check_branch
      %2222 = sbr.rel (0) target = $region45
    $region44: #{se_bottleneck_forward.1} parent=1 // pred_region
      %2223 = dma.done [#allocation5], 2048
    $region45: #{se_bottleneck_forward.1} parent=1 // pred_fallthru
      _
    %2224 = vsyncpa [#allocation5], 1

</llo_original>
